<compile_context>
chip_gen: v7x
topology: tpu7x:2x2x1
jax: 0.10.0
libtpu: 0.0.40
codegen_flags: <defaults>
</compile_context>

<pallas_src>
import jax
import jax.numpy as jnp
from jax.experimental import pallas as pl
from jax.experimental.pallas import tpu as pltpu


def _lora_qkv_kernel(x_ref, w_ref, b_ref, aq_ref, bq_ref, av_ref, bv_ref,
                     out_ref):
    # grid = (3, num_token_tiles); axis 0 selects the q/k/v third.
    j = pl.program_id(0)
    x = x_ref[...]                                          # (tm, C) compute dtype

    # Base projection for this third: (tm, C) @ (C, C), f32 accumulation + bias.
    base = jnp.dot(x, w_ref[...], preferred_element_type=jnp.float32)
    out_ref[...] = (base + b_ref[...]).astype(out_ref.dtype)

    @pl.when(j == 0)                                        # q third: add LoRA-q
    def _add_lora_q():
        xa = jnp.dot(x, aq_ref[...], preferred_element_type=jnp.float32)
        dq = jnp.dot(xa.astype(bq_ref.dtype), bq_ref[...],
                     preferred_element_type=jnp.float32)
        out_ref[...] += dq.astype(out_ref.dtype)

    @pl.when(j == 2)                                        # v third: add LoRA-v
    def _add_lora_v():
        xa = jnp.dot(x, av_ref[...], preferred_element_type=jnp.float32)
        dv = jnp.dot(xa.astype(bv_ref.dtype), bv_ref[...],
                     preferred_element_type=jnp.float32)
        out_ref[...] += dv.astype(out_ref.dtype)


def lora_qkv(x, w_qkv, b_qkv, a_q, b_q, a_v, b_v, *, tm=256,
             compute_dtype=None):
    """x: (B, H, W, C).
    w_qkv: (3C, C), b_qkv: (3C,)  (PyTorch nn.Linear convention: out, in)
    a_q: (r, C), b_q: (C, r), a_v: (r, C), b_v: (C, r)  (LoRA, bias=False)
    compute_dtype: optional dtype (e.g. jnp.bfloat16) for x / weights;
                   accumulation stays f32, output stays x.dtype.
    returns (B, H, W, 3C)
    """
    B, H, W, C = x.shape
    threeC, Cin = w_qkv.shape
    assert Cin == C and threeC == 3 * C
    r = a_q.shape[0]
    # The kernel tiles the output by thirds of width C; keep lane alignment.
    assert C % 128 == 0, (
        "C must be a multiple of 128 (SAM ViT dims 768/1024/1280 all are)")

    out_dtype = x.dtype
    cdt = jnp.dtype(compute_dtype) if compute_dtype is not None else jnp.dtype(x.dtype)

    M = B * H * W
    # Token tile: multiple of 8 sublanes, no larger than (padded) M.
    tm_eff = min(tm, ((M + 7) // 8) * 8)
    n_m = pl.cdiv(M, tm_eff)
    M_pad = n_m * tm_eff

    x2 = x.reshape(M, C).astype(cdt)
    if M_pad != M:
        x2 = jnp.pad(x2, ((0, M_pad - M), (0, 0)))          # ragged last tile

    # Pre-transpose weights so every matmul is plain (M,K)@(K,N).
    wqkv_t = w_qkv.T.astype(cdt)                            # (C, 3C)
    bqkv2 = b_qkv.reshape(1, threeC).astype(jnp.float32)    # (1, 3C), f32 bias
    aq_t = a_q.T.astype(cdt)                                # (C, r)
    bq_t = b_q.T.astype(cdt)                                # (r, C)
    av_t = a_v.T.astype(cdt)                                # (C, r)
    bv_t = b_v.T.astype(cdt)                                # (r, C)

    # VMEM budget: double-buffered x / W-third / bias / out tiles + LoRA weights.
    csz = jnp.dtype(cdt).itemsize
    osz = jnp.dtype(out_dtype).itemsize
    est = 2 * (tm_eff * C * csz        # x tile
               + C * C * csz           # W_qkv^T third
               + C * 4                 # bias third (f32)
               + tm_eff * C * osz)     # output tile
    est += 2 * (2 * C * r * csz + 2 * r * C * csz)          # LoRA A/B (tiny)
    vmem_limit = int(min(max(2 * est, 16 << 20), 64 << 20))

    grid = (3, n_m)    # (qkv third: slow, arbitrary) x (token tile: fast, parallel)
    out = pl.pallas_call(
        _lora_qkv_kernel,
        out_shape=jax.ShapeDtypeStruct((M_pad, threeC), out_dtype),
        grid_spec=pltpu.PrefetchScalarGridSpec(
            num_scalar_prefetch=0,
            grid=grid,
            in_specs=[
                pl.BlockSpec((tm_eff, C), lambda j, i: (i, 0)),   # x tile
                pl.BlockSpec((C, C),      lambda j, i: (0, j)),   # W_qkv^T third
                pl.BlockSpec((1, C),      lambda j, i: (0, j)),   # bias third
                pl.BlockSpec((C, r),      lambda j, i: (0, 0)),   # A_q^T
                pl.BlockSpec((r, C),      lambda j, i: (0, 0)),   # B_q^T
                pl.BlockSpec((C, r),      lambda j, i: (0, 0)),   # A_v^T
                pl.BlockSpec((r, C),      lambda j, i: (0, 0)),   # B_v^T
            ],
            out_specs=pl.BlockSpec((tm_eff, C), lambda j, i: (i, j)),
        ),
        compiler_params=pltpu.CompilerParams(
            dimension_semantics=("arbitrary", "parallel"),
            vmem_limit_bytes=vmem_limit),
    )(x2, wqkv_t, bqkv2, aq_t, bq_t, av_t, bv_t)

    return out[:M].reshape(B, H, W, threeC)


def lora_qkv_ref(x, w_qkv, b_qkv, a_q, b_q, a_v, b_v):
    """Plain-JAX reference mirroring the PyTorch forward exactly (f32)."""
    qkv = jnp.einsum("bhwc,oc->bhwo", x, w_qkv) + b_qkv
    new_q = jnp.einsum("bhwr,or->bhwo", jnp.einsum("bhwc,rc->bhwr", x, a_q), b_q)
    new_v = jnp.einsum("bhwr,or->bhwo", jnp.einsum("bhwc,rc->bhwr", x, a_v), b_v)
    C = x.shape[-1]
    qkv = qkv.at[..., :C].add(new_q)
    qkv = qkv.at[..., -C:].add(new_v)
    return qkv


if __name__ == "__main__":
    # Small deterministic configuration consistent with the module:
    # B=2 images, 8x8 token grid, embedding dim C=128 (lane-aligned, as all
    # real SAM dims are), LoRA rank r=4.
    B, H, W, C, r = 2, 8, 8, 128, 4

    key = jax.random.PRNGKey(0)
    kx, kw, kb, ka1, kb1, ka2, kb2 = jax.random.split(key, 7)

    x = jax.random.normal(kx, (B, H, W, C), dtype=jnp.float32)
    # nn.Linear(dim, 3*dim, bias=True)
    w_qkv = jax.random.normal(kw, (3 * C, C), dtype=jnp.float32) * 0.05
    b_qkv = jax.random.normal(kb, (3 * C,), dtype=jnp.float32) * 0.05
    # LoRA A/B linears (bias=False): A: dim->r, B: r->dim
    a_q = jax.random.normal(ka1, (r, C), dtype=jnp.float32) * 0.05
    b_q = jax.random.normal(kb1, (C, r), dtype=jnp.float32) * 0.05
    a_v = jax.random.normal(ka2, (r, C), dtype=jnp.float32) * 0.05
    b_v = jax.random.normal(kb2, (C, r), dtype=jnp.float32) * 0.05

    ref = lora_qkv_ref(x, w_qkv, b_qkv, a_q, b_q, a_v, b_v)

    # f32 path (faithful to the PyTorch module numerics)
    out = jax.block_until_ready(lora_qkv(x, w_qkv, b_qkv, a_q, b_q, a_v, b_v))
    assert out.shape == (B, H, W, 3 * C)
    assert jnp.allclose(out, ref, atol=2e-3, rtol=2e-3), "f32 kernel mismatch"

    # Ragged-M path (M=128 not divisible by tm=48 -> padded last tile)
    out_rag = jax.block_until_ready(
        lora_qkv(x, w_qkv, b_qkv, a_q, b_q, a_v, b_v, tm=48))
    assert jnp.allclose(out_rag, ref, atol=2e-3, rtol=2e-3), "ragged-M mismatch"

    # bf16 compute path (perf option: halves HBM/VMEM traffic; f32 accumulation
    # keeps the error small but looser than the f32 reference tolerance).
    out_bf16 = jax.block_until_ready(
        lora_qkv(x, w_qkv, b_qkv, a_q, b_q, a_v, b_v,
                 compute_dtype=jnp.bfloat16))
    assert jnp.allclose(out_bf16, ref, atol=5e-2, rtol=5e-2), "bf16 kernel mismatch"

    print("KERNEL_OK")
</pallas_src>

<mosaic_0001>
module attributes {stable_mosaic.version = 11 : i64} {
  func.func @_lora_qkv_kernel(%arg0: i32, %arg1: i32, %arg2: memref<128x128xf32, #tpu.memory_space<vmem>>, %arg3: memref<128x128xf32, #tpu.memory_space<vmem>>, %arg4: memref<1x128xf32, #tpu.memory_space<vmem>>, %arg5: memref<128x4xf32, #tpu.memory_space<vmem>>, %arg6: memref<4x128xf32, #tpu.memory_space<vmem>>, %arg7: memref<128x4xf32, #tpu.memory_space<vmem>>, %arg8: memref<4x128xf32, #tpu.memory_space<vmem>>, %arg9: memref<128x128xf32, #tpu.memory_space<vmem>>) attributes {dimension_semantics = [#tpu.dimension_semantics<arbitrary>, #tpu.dimension_semantics<parallel>], iteration_bounds = array<i64: 3, 1>, scalar_prefetch = 0 : i64, scratch_operands = 0 : i64, tpu.core_type = #tpu.core_type<tc>, window_params = [{transform_indices = @transform_0, window_bounds = array<i64: 128, 128>}, {transform_indices = @transform_1, window_bounds = array<i64: 128, 128>}, {transform_indices = @transform_2, window_bounds = array<i64: 1, 128>}, {pipeline_mode = #tpu.pipeline_mode<synchronous>, transform_indices = @transform_3, window_bounds = array<i64: 128, 4>}, {pipeline_mode = #tpu.pipeline_mode<synchronous>, transform_indices = @transform_4, window_bounds = array<i64: 4, 128>}, {pipeline_mode = #tpu.pipeline_mode<synchronous>, transform_indices = @transform_5, window_bounds = array<i64: 128, 4>}, {pipeline_mode = #tpu.pipeline_mode<synchronous>, transform_indices = @transform_6, window_bounds = array<i64: 4, 128>}, {transform_indices = @transform_7, window_bounds = array<i64: 128, 128>}]} {
    %c0 = arith.constant 0 : index
    %c0_0 = arith.constant 0 : index
    %0 = vector.load %arg2[%c0, %c0_0] : memref<128x128xf32, #tpu.memory_space<vmem>>, vector<128x128xf32>
    %c0_1 = arith.constant 0 : index
    %c0_2 = arith.constant 0 : index
    %1 = vector.load %arg3[%c0_1, %c0_2] : memref<128x128xf32, #tpu.memory_space<vmem>>, vector<128x128xf32>
    %cst = arith.constant dense<0.000000e+00> : vector<128x128xf32>
    %2 = tpu.matmul %0, %1, %cst {dimension_numbers = #tpu.dot_dimension_numbers<[1], [0], [0], [1], [0, 0, 1, 1], [], []>} : vector<128x128xf32>, vector<128x128xf32>, vector<128x128xf32> -> vector<128x128xf32>
    %c0_3 = arith.constant 0 : index
    %c0_4 = arith.constant 0 : index
    %3 = vector.load %arg4[%c0_3, %c0_4] : memref<1x128xf32, #tpu.memory_space<vmem>>, vector<1x128xf32>
    %4 = vector.broadcast %3 : vector<1x128xf32> to vector<128x128xf32>
    %5 = arith.addf %2, %4 : vector<128x128xf32>
    %c0_5 = arith.constant 0 : index
    %c0_6 = arith.constant 0 : index
    %6 = vector.load %arg9[%c0_5, %c0_6] : memref<128x128xf32, #tpu.memory_space<vmem>>, vector<128x128xf32>
    tpu.vector_store %arg9[%c0_5, %c0_6], %5 {strides = array<i32>} : memref<128x128xf32, #tpu.memory_space<vmem>>, vector<128x128xf32>,
    %c0_i32 = arith.constant 0 : i32
    %7 = arith.cmpi eq, %arg0, %c0_i32 : i32
    %8 = arith.extui %7 : i1 to i32
    %c0_i32_7 = arith.constant 0 : i32
    %9 = arith.cmpi ne, %8, %c0_i32_7 : i32
    scf.if %9 {
      %c0_9 = arith.constant 0 : index
      %c0_10 = arith.constant 0 : index
      %13 = vector.load %arg5[%c0_9, %c0_10] : memref<128x4xf32, #tpu.memory_space<vmem>>, vector<128x4xf32>
      %cst_11 = arith.constant dense<0.000000e+00> : vector<128x4xf32>
      %14 = tpu.matmul %0, %13, %cst_11 {dimension_numbers = #tpu.dot_dimension_numbers<[1], [0], [0], [1], [0, 0, 1, 1], [], []>} : vector<128x128xf32>, vector<128x4xf32>, vector<128x4xf32> -> vector<128x4xf32>
      %c0_12 = arith.constant 0 : index
      %c0_13 = arith.constant 0 : index
      %15 = vector.load %arg6[%c0_12, %c0_13] : memref<4x128xf32, #tpu.memory_space<vmem>>, vector<4x128xf32>
      %cst_14 = arith.constant dense<0.000000e+00> : vector<128x128xf32>
      %16 = tpu.matmul %14, %15, %cst_14 {dimension_numbers = #tpu.dot_dimension_numbers<[1], [0], [0], [1], [0, 0, 1, 1], [], []>} : vector<128x4xf32>, vector<4x128xf32>, vector<128x128xf32> -> vector<128x128xf32>
      %c0_15 = arith.constant 0 : index
      %c0_16 = arith.constant 0 : index
      %17 = vector.load %arg9[%c0_15, %c0_16] : memref<128x128xf32, #tpu.memory_space<vmem>>, vector<128x128xf32>
      %18 = arith.addf %17, %16 : vector<128x128xf32>
      %c0_17 = arith.constant 0 : index
      %c0_18 = arith.constant 0 : index
      %19 = vector.load %arg9[%c0_17, %c0_18] : memref<128x128xf32, #tpu.memory_space<vmem>>, vector<128x128xf32>
      tpu.vector_store %arg9[%c0_17, %c0_18], %18 {strides = array<i32>} : memref<128x128xf32, #tpu.memory_space<vmem>>, vector<128x128xf32>,
    } else {
    }
    %c2_i32 = arith.constant 2 : i32
    %10 = arith.cmpi eq, %arg0, %c2_i32 : i32
    %11 = arith.extui %10 : i1 to i32
    %c0_i32_8 = arith.constant 0 : i32
    %12 = arith.cmpi ne, %11, %c0_i32_8 : i32
    scf.if %12 {
      %c0_9 = arith.constant 0 : index
      %c0_10 = arith.constant 0 : index
      %13 = vector.load %arg7[%c0_9, %c0_10] : memref<128x4xf32, #tpu.memory_space<vmem>>, vector<128x4xf32>
      %cst_11 = arith.constant dense<0.000000e+00> : vector<128x4xf32>
      %14 = tpu.matmul %0, %13, %cst_11 {dimension_numbers = #tpu.dot_dimension_numbers<[1], [0], [0], [1], [0, 0, 1, 1], [], []>} : vector<128x128xf32>, vector<128x4xf32>, vector<128x4xf32> -> vector<128x4xf32>
      %c0_12 = arith.constant 0 : index
      %c0_13 = arith.constant 0 : index
      %15 = vector.load %arg8[%c0_12, %c0_13] : memref<4x128xf32, #tpu.memory_space<vmem>>, vector<4x128xf32>
      %cst_14 = arith.constant dense<0.000000e+00> : vector<128x128xf32>
      %16 = tpu.matmul %14, %15, %cst_14 {dimension_numbers = #tpu.dot_dimension_numbers<[1], [0], [0], [1], [0, 0, 1, 1], [], []>} : vector<128x4xf32>, vector<4x128xf32>, vector<128x128xf32> -> vector<128x128xf32>
      %c0_15 = arith.constant 0 : index
      %c0_16 = arith.constant 0 : index
      %17 = vector.load %arg9[%c0_15, %c0_16] : memref<128x128xf32, #tpu.memory_space<vmem>>, vector<128x128xf32>
      %18 = arith.addf %17, %16 : vector<128x128xf32>
      %c0_17 = arith.constant 0 : index
      %c0_18 = arith.constant 0 : index
      %19 = vector.load %arg9[%c0_17, %c0_18] : memref<128x128xf32, #tpu.memory_space<vmem>>, vector<128x128xf32>
      tpu.vector_store %arg9[%c0_17, %c0_18], %18 {strides = array<i32>} : memref<128x128xf32, #tpu.memory_space<vmem>>, vector<128x128xf32>,
    } else {
    }
    return
  }
  func.func @transform_0(%arg0: i32, %arg1: i32) -> (i32, i32) {
    %c0_i32 = arith.constant 0 : i32
    %c0_i32_0 = arith.constant 0 : i32
    return %arg1, %c0_i32 : i32, i32
  }
  func.func @transform_1(%arg0: i32, %arg1: i32) -> (i32, i32) {
    %c0_i32 = arith.constant 0 : i32
    %c0_i32_0 = arith.constant 0 : i32
    return %c0_i32, %arg0 : i32, i32
  }
  func.func @transform_2(%arg0: i32, %arg1: i32) -> (i32, i32) {
    %c0_i32 = arith.constant 0 : i32
    %c0_i32_0 = arith.constant 0 : i32
    return %c0_i32, %arg0 : i32, i32
  }
  func.func @transform_3(%arg0: i32, %arg1: i32) -> (i32, i32) {
    %c0_i32 = arith.constant 0 : i32
    %c0_i32_0 = arith.constant 0 : i32
    %c0_i32_1 = arith.constant 0 : i32
    return %c0_i32, %c0_i32_0 : i32, i32
  }
  func.func @transform_4(%arg0: i32, %arg1: i32) -> (i32, i32) {
    %c0_i32 = arith.constant 0 : i32
    %c0_i32_0 = arith.constant 0 : i32
    %c0_i32_1 = arith.constant 0 : i32
    return %c0_i32, %c0_i32_0 : i32, i32
  }
  func.func @transform_5(%arg0: i32, %arg1: i32) -> (i32, i32) {
    %c0_i32 = arith.constant 0 : i32
    %c0_i32_0 = arith.constant 0 : i32
    %c0_i32_1 = arith.constant 0 : i32
    return %c0_i32, %c0_i32_0 : i32, i32
  }
  func.func @transform_6(%arg0: i32, %arg1: i32) -> (i32, i32) {
    %c0_i32 = arith.constant 0 : i32
    %c0_i32_0 = arith.constant 0 : i32
    %c0_i32_1 = arith.constant 0 : i32
    return %c0_i32, %c0_i32_0 : i32, i32
  }
  func.func @transform_7(%arg0: i32, %arg1: i32) -> (i32, i32) {
    %c0_i32 = arith.constant 0 : i32
    return %arg1, %arg0 : i32, i32
  }
}

</mosaic_0001>

<llo_original>
// kernel: tpu_custom_call.1
$region0: #{tpu_custom_call.1}
  #allocation0 [shape = 'u32[]', space=smem, size = 0x4, offset = 0x4, fixed_abs, tag = 'smem constant byte address 0x4 - core index']
  #allocation1 [shape = 'u32[144,128]{1,0:T(1,128)}', space=vmem, size = 0x12000, scoped, tag = 'internal scratch']
  %s0 = inlined_call_operand.vmem [shape: f32[128,128], index: 0, kind: input, shape index: {}]
  %s1 = inlined_call_operand.hbm [shape: f32[128,384], index: 1, kind: input, shape index: {}]
  %s2 = inlined_call_operand.vmem [shape: f32[1,384], index: 2, kind: input, shape index: {}]
  %s3 = inlined_call_operand.vmem [shape: f32[128,4], index: 3, kind: input, shape index: {}]
  %s4 = inlined_call_operand.vmem [shape: f32[4,128], index: 4, kind: input, shape index: {}]
  %s5 = inlined_call_operand.vmem [shape: f32[128,4], index: 5, kind: input, shape index: {}]
  %s6 = inlined_call_operand.vmem [shape: f32[4,128], index: 6, kind: input, shape index: {}]
  %s7 = inlined_call_operand.hbm [shape: f32[128,384], index: 7, kind: output, shape index: {}]
  %s8 = sld [smem:[#allocation0]]
  $region73: #{tpu_custom_call.1} parent=0
    _
  %s10 = ssub.s32 1, %s8
  %s11 = scalar_select 0, %s10, %s8
  $region1: #{tpu_custom_call.1} parent=0
    #allocation2 [shape = 'u8[131072]{0}', space=vmem, size = 0x20000, scoped, tag = 'input window, operand 1']
    #allocation3 [shape = 's32[2]{0}', space=sflag, size = 0x8, scoped, tag = 'scoped memory for tpu_custom_call.1']
    #allocation4 [shape = 's32[2]{0}', space=sflag, size = 0x8, scoped, tag = 'scoped memory for tpu_custom_call.1']
    #allocation5 [shape = 'u8[131072]{0}', space=vmem, size = 0x20000, scoped, tag = 'output window, operand 0']
    %12 = vsyncpa [#allocation3], 0
    %s13 = scalar_lea.sflag [#allocation3], 1
    %14 = vsyncpa %s13, 0
    %15 = vsyncpa [#allocation4], 0
    %s16 = scalar_lea.sflag [#allocation4], 1
    %17 = vsyncpa %s16, 0
    loop: start=0, step=1, limit=5
    $region2: #{tpu_custom_call.1} parent=1 // loop_pre_header
      _
    $region3: #{tpu_custom_call.1} parent=1 // loop_header
      %s19 = sphi 0, %s23
      %p20 = scmp.ge.s32.totalorder %s19, 5
      %s26 = sphi 0, %s38
      %s27 = sphi 0, %s34
      %s28 = sphi 0, %s26
      %s29 = sphi 0, %s27
      %s30 = sphi 0, %s28
      %s31 = sphi 0, %s29
      %s41 = sphi 0, %s43
      %s44 = sphi 0, %s41
      %s45 = sphi 0, %s44
      %s61 = sphi 0, %s45
      %s67 = sphi 0, %s69
      %s70 = sphi 0, %s67
      %s71 = sphi 0, %s70
      %s87 = sphi 0, %s71
      %s93 = sphi 0, %s95
      %s96 = sphi 0, %s93
      %s97 = sphi 0, %s96
      %s113 = sphi 0, %s97
      %s117 = sphi 0, %s117
      %s119 = sphi 0, %s117
      %s120 = sphi 0, %s119
      %s134 = sphi 0, %s120
      %s138 = sphi 0, %s138
      %s140 = sphi 0, %s138
      %s141 = sphi 0, %s140
      %s155 = sphi 0, %s141
      %s159 = sphi 0, %s159
      %s161 = sphi 0, %s159
      %s162 = sphi 0, %s161
      %s176 = sphi 0, %s162
      %s180 = sphi 0, %s180
      %s182 = sphi 0, %s180
      %s183 = sphi 0, %s182
      %s197 = sphi 0, %s183
      %s205 = sphi 0, %s207
      %s208 = sphi 0, %s205
      %s209 = sphi 0, %s208
      %s225 = sphi 0, %s209
    $region4: #{tpu_custom_call.1} parent=1 // loop_header_branch
      %22 = sbr.rel (%p20) target = $region8
    $region5: #{tpu_custom_call.1} parent=1 // loop_body
      %s24 = ssub.s32 %s19, 1
      %s25 = ssub.s32 %s19, 2
      %s32 = sadd.s32 1, %s27
      %p33 = scmp.ge.s32.totalorder %s32, 1
      %s34 = scalar_select %p33, 0, %s32
      %s35 = sadd.s32 1, %s26
      %s36 = scalar_select %p33, %s35, %s26
      %p37 = scmp.ge.s32.totalorder %s36, 3
      %s38 = scalar_select %p37, 0, %s36
      %s39 = ssub.s32 %s27, %s34
      %p40 = scmp.eq.s32.totalorder %s39, 0
      %s42 = sadd.s32 %s41, 1
      %s43 = scalar_select %p40, %s41, %s42
      %p46 = pneg %p40
      %p47 = scmp.eq.s32.totalorder %s19, 2
      %p48 = por %p46, %p47
      %p49 = scmp.ne.s32.totalorder %s41, %s44
      %p50 = scmp.eq.s32.totalorder %s19, 0
      %p51 = por %p49, %p50
      %p52 = scmp.ne.s32.totalorder %s41, %s44
      %p53 = scmp.eq.s32.totalorder %s24, 2
      %p54 = por %p52, %p53
      %p55 = scmp.ne.s32.totalorder %s44, %s45
      %p56 = scmp.eq.s32.totalorder %s24, 0
      %p57 = por %p55, %p56
      %p58 = scmp.ne.s32.totalorder %s44, %s45
      %p59 = scmp.eq.s32.totalorder %s25, 2
      %p60 = por %p58, %p59
      %p62 = scmp.ne.s32.totalorder %s45, %s61
      %p63 = scmp.eq.s32.totalorder %s25, 0
      %p64 = por %p62, %p63
      %s65 = ssub.s32 %s26, %s38
      %p66 = scmp.eq.s32.totalorder %s65, 0
      %s68 = sadd.s32 %s67, 1
      %s69 = scalar_select %p66, %s67, %s68
      %p72 = pneg %p66
      %p73 = scmp.eq.s32.totalorder %s19, 2
      %p74 = por %p72, %p73
      %p75 = scmp.ne.s32.totalorder %s67, %s70
      %p76 = scmp.eq.s32.totalorder %s19, 0
      %p77 = por %p75, %p76
      %p78 = scmp.ne.s32.totalorder %s67, %s70
      %p79 = scmp.eq.s32.totalorder %s24, 2
      %p80 = por %p78, %p79
      %p81 = scmp.ne.s32.totalorder %s70, %s71
      %p82 = scmp.eq.s32.totalorder %s24, 0
      %p83 = por %p81, %p82
      %p84 = scmp.ne.s32.totalorder %s70, %s71
      %p85 = scmp.eq.s32.totalorder %s25, 2
      %p86 = por %p84, %p85
      %p88 = scmp.ne.s32.totalorder %s71, %s87
      %p89 = scmp.eq.s32.totalorder %s25, 0
      %p90 = por %p88, %p89
      %s91 = ssub.s32 %s26, %s38
      %p92 = scmp.eq.s32.totalorder %s91, 0
      %s94 = sadd.s32 %s93, 1
      %s95 = scalar_select %p92, %s93, %s94
      %p98 = pneg %p92
      %p99 = scmp.eq.s32.totalorder %s19, 2
      %p100 = por %p98, %p99
      %p101 = scmp.ne.s32.totalorder %s93, %s96
      %p102 = scmp.eq.s32.totalorder %s19, 0
      %p103 = por %p101, %p102
      %p104 = scmp.ne.s32.totalorder %s93, %s96
      %p105 = scmp.eq.s32.totalorder %s24, 2
      %p106 = por %p104, %p105
      %p107 = scmp.ne.s32.totalorder %s96, %s97
      %p108 = scmp.eq.s32.totalorder %s24, 0
      %p109 = por %p107, %p108
      %p110 = scmp.ne.s32.totalorder %s96, %s97
      %p111 = scmp.eq.s32.totalorder %s25, 2
      %p112 = por %p110, %p111
      %p114 = scmp.ne.s32.totalorder %s97, %s113
      %p115 = scmp.eq.s32.totalorder %s25, 0
      %p116 = por %p114, %p115
      %s118 = sadd.s32 %s117, 1
      %p121 = scmp.eq.s32.totalorder %s19, 2
      %p122 = scmp.ne.s32.totalorder %s117, %s119
      %p123 = scmp.eq.s32.totalorder %s19, 0
      %p124 = por %p122, %p123
      %p125 = scmp.ne.s32.totalorder %s117, %s119
      %p126 = scmp.eq.s32.totalorder %s24, 2
      %p127 = por %p125, %p126
      %p128 = scmp.ne.s32.totalorder %s119, %s120
      %p129 = scmp.eq.s32.totalorder %s24, 0
      %p130 = por %p128, %p129
      %p131 = scmp.ne.s32.totalorder %s119, %s120
      %p132 = scmp.eq.s32.totalorder %s25, 2
      %p133 = por %p131, %p132
      %p135 = scmp.ne.s32.totalorder %s120, %s134
      %p136 = scmp.eq.s32.totalorder %s25, 0
      %p137 = por %p135, %p136
      %s139 = sadd.s32 %s138, 1
      %p142 = scmp.eq.s32.totalorder %s19, 2
      %p143 = scmp.ne.s32.totalorder %s138, %s140
      %p144 = scmp.eq.s32.totalorder %s19, 0
      %p145 = por %p143, %p144
      %p146 = scmp.ne.s32.totalorder %s138, %s140
      %p147 = scmp.eq.s32.totalorder %s24, 2
      %p148 = por %p146, %p147
      %p149 = scmp.ne.s32.totalorder %s140, %s141
      %p150 = scmp.eq.s32.totalorder %s24, 0
      %p151 = por %p149, %p150
      %p152 = scmp.ne.s32.totalorder %s140, %s141
      %p153 = scmp.eq.s32.totalorder %s25, 2
      %p154 = por %p152, %p153
      %p156 = scmp.ne.s32.totalorder %s141, %s155
      %p157 = scmp.eq.s32.totalorder %s25, 0
      %p158 = por %p156, %p157
      %s160 = sadd.s32 %s159, 1
      %p163 = scmp.eq.s32.totalorder %s19, 2
      %p164 = scmp.ne.s32.totalorder %s159, %s161
      %p165 = scmp.eq.s32.totalorder %s19, 0
      %p166 = por %p164, %p165
      %p167 = scmp.ne.s32.totalorder %s159, %s161
      %p168 = scmp.eq.s32.totalorder %s24, 2
      %p169 = por %p167, %p168
      %p170 = scmp.ne.s32.totalorder %s161, %s162
      %p171 = scmp.eq.s32.totalorder %s24, 0
      %p172 = por %p170, %p171
      %p173 = scmp.ne.s32.totalorder %s161, %s162
      %p174 = scmp.eq.s32.totalorder %s25, 2
      %p175 = por %p173, %p174
      %p177 = scmp.ne.s32.totalorder %s162, %s176
      %p178 = scmp.eq.s32.totalorder %s25, 0
      %p179 = por %p177, %p178
      %s181 = sadd.s32 %s180, 1
      %p184 = scmp.eq.s32.totalorder %s19, 2
      %p185 = scmp.ne.s32.totalorder %s180, %s182
      %p186 = scmp.eq.s32.totalorder %s19, 0
      %p187 = por %p185, %p186
      %p188 = scmp.ne.s32.totalorder %s180, %s182
      %p189 = scmp.eq.s32.totalorder %s24, 2
      %p190 = por %p188, %p189
      %p191 = scmp.ne.s32.totalorder %s182, %s183
      %p192 = scmp.eq.s32.totalorder %s24, 0
      %p193 = por %p191, %p192
      %p194 = scmp.ne.s32.totalorder %s182, %s183
      %p195 = scmp.eq.s32.totalorder %s25, 2
      %p196 = por %p194, %p195
      %p198 = scmp.ne.s32.totalorder %s183, %s197
      %p199 = scmp.eq.s32.totalorder %s25, 0
      %p200 = por %p198, %p199
      %s201 = ssub.s32 %s27, %s34
      %s202 = ssub.s32 %s26, %s38
      %s203 = sor.u32 %s201, %s202
      %p204 = scmp.eq.s32.totalorder %s203, 0
      %s206 = sadd.s32 %s205, 1
      %s207 = scalar_select %p204, %s205, %s206
      %p210 = pneg %p204
      %p211 = scmp.eq.s32.totalorder %s19, 2
      %p212 = por %p210, %p211
      %p213 = scmp.ne.s32.totalorder %s205, %s208
      %p214 = scmp.eq.s32.totalorder %s19, 0
      %p215 = por %p213, %p214
      %p216 = scmp.ne.s32.totalorder %s205, %s208
      %p217 = scmp.eq.s32.totalorder %s24, 2
      %p218 = por %p216, %p217
      %p219 = scmp.ne.s32.totalorder %s208, %s209
      %p220 = scmp.eq.s32.totalorder %s24, 0
      %p221 = por %p219, %p220
      %p222 = scmp.ne.s32.totalorder %s208, %s209
      %p223 = scmp.eq.s32.totalorder %s25, 2
      %p224 = por %p222, %p223
      %p226 = scmp.ne.s32.totalorder %s209, %s225
      %p227 = scmp.eq.s32.totalorder %s25, 0
      %p228 = por %p226, %p227
      %p229 = scmp.le.s32.totalorder 1, %s19
      %p230 = scmp.lt.s32.totalorder %s19, 4
      %p231 = pnand %p229, %p230
      %p232 = pneg %p231
      // Predicated region
      $region9: #{tpu_custom_call.1} parent=5 // pred_check
        _
      $region10: #{tpu_custom_call.1} parent=5 // pred_check_branch
        %234 = sbr.rel (%p231) target = $region12
      $region11: #{tpu_custom_call.1} parent=5 // pred_region
        %s235 = ssub.s32 %s19, 1
        // Predicated region
        $region13: #{tpu_custom_call.1} parent=11 // pred_check
          %p236 = pneg %p57
        $region14: #{tpu_custom_call.1} parent=11 // pred_check_branch
          %238 = sbr.rel (%p236) target = $region16
        $region15: #{tpu_custom_call.1} parent=11 // pred_region
          %s239 = smul.u32 16, %s29
          %p240 = scmp.lt.s32.totalorder %s239, 15
          %s241 = scalar_select %p240, %s239, 15
          %s242 = smul.addr %s241, 8
          %s243 = scalar_lea.vmem %s0, %s242
          %s244 = smul.u32 16, %s29
        $region16: #{tpu_custom_call.1} parent=11 // pred_fallthru
          _
        // Predicated region
        $region17: #{tpu_custom_call.1} parent=11 // pred_check
          %p245 = pneg %p130
        $region18: #{tpu_custom_call.1} parent=11 // pred_check_branch
          %247 = sbr.rel (%p245) target = $region20
        $region19: #{tpu_custom_call.1} parent=11 // pred_region
          _
        $region20: #{tpu_custom_call.1} parent=11 // pred_fallthru
          _
        // Predicated region
        $region21: #{tpu_custom_call.1} parent=11 // pred_check
          %p248 = pneg %p151
        $region22: #{tpu_custom_call.1} parent=11 // pred_check_branch
          %250 = sbr.rel (%p248) target = $region24
        $region23: #{tpu_custom_call.1} parent=11 // pred_region
          _
        $region24: #{tpu_custom_call.1} parent=11 // pred_fallthru
          _
        // Predicated region
        $region25: #{tpu_custom_call.1} parent=11 // pred_check
          %p251 = pneg %p172
        $region26: #{tpu_custom_call.1} parent=11 // pred_check_branch
          %253 = sbr.rel (%p251) target = $region28
        $region27: #{tpu_custom_call.1} parent=11 // pred_region
          _
        $region28: #{tpu_custom_call.1} parent=11 // pred_fallthru
          _
        // Predicated region
        $region29: #{tpu_custom_call.1} parent=11 // pred_check
          %p254 = pneg %p193
        $region30: #{tpu_custom_call.1} parent=11 // pred_check_branch
          %256 = sbr.rel (%p254) target = $region32
        $region31: #{tpu_custom_call.1} parent=11 // pred_region
          _
        $region32: #{tpu_custom_call.1} parent=11 // pred_fallthru
          _
      $region12: #{tpu_custom_call.1} parent=5 // pred_fallthru
        _
      %p257 = scmp.lt.s32.totalorder %s19, 3
      // Predicated region
      $region33: #{tpu_custom_call.1} parent=5 // pred_check
        %p258 = pneg %p257
      $region34: #{tpu_custom_call.1} parent=5 // pred_check_branch
        %260 = sbr.rel (%p258) target = $region36
      $region35: #{tpu_custom_call.1} parent=5 // pred_region
        // Predicated region
        $region37: #{tpu_custom_call.1} parent=35 // pred_check
          %p261 = pneg %p77
        $region38: #{tpu_custom_call.1} parent=35 // pred_check_branch
          %263 = sbr.rel (%p261) target = $region40
        $region39: #{tpu_custom_call.1} parent=35 // pred_region
          %s264 = sand.u32 %s67, 1
          %s265 = scalar_lea.sflag [#allocation3], %s264
          %s266 = sand.u32 %s67, 1
          %s267 = smul.addr %s266, 128
          %s268 = scalar_lea.vmem [#allocation2], %s267
          %s270 = ssub.s32 2048, 2048
          %271 = vsyncadd %s265, %s270
          %s272 = smul.addr %s26, 128
          %s273 = scalar_lea.hbm %s1, %s272
          %s274 = sshll.u32 %s268, 4
          %s275 = int_to_ptr.vmem [resolvable:$true] %s274
          %280 = dma.hbm_to_vmem [thread:$0]  %s273, 2048, %s275, %s265, 384, 128, 8
        $region40: #{tpu_custom_call.1} parent=35 // pred_fallthru
          _
        // Predicated region
        $region41: #{tpu_custom_call.1} parent=35 // pred_check
          %p281 = pneg %p103
        $region42: #{tpu_custom_call.1} parent=35 // pred_check_branch
          %283 = sbr.rel (%p281) target = $region44
        $region43: #{tpu_custom_call.1} parent=35 // pred_region
          %p284 = scmp.lt.s32.totalorder %s26, 2
          %s285 = scalar_select %p284, %s26, 2
          %s286 = scalar_lea.vmem %s2, %s285
        $region44: #{tpu_custom_call.1} parent=35 // pred_fallthru
          _
      $region36: #{tpu_custom_call.1} parent=5 // pred_fallthru
        _
      %p287 = scmp.le.s32.totalorder 1, %s19
      %p288 = scmp.lt.s32.totalorder %s19, 4
      %p289 = pnand %p287, %p288
      %p290 = pneg %p289
      // Predicated region
      $region45: #{tpu_custom_call.1} parent=5 // pred_check
        _
      $region46: #{tpu_custom_call.1} parent=5 // pred_check_branch
        %292 = sbr.rel (%p289) target = $region48
      $region47: #{tpu_custom_call.1} parent=5 // pred_region
        %s293 = ssub.s32 %s19, 1
        %s294 = sand.u32 %s70, 1
        %s295 = scalar_lea.sflag [#allocation3], %s294
        %s296 = sand.u32 %s70, 1
        %s297 = smul.addr %s296, 128
        %s298 = scalar_lea.vmem [#allocation2], %s297
        // Predicated region
        $region49: #{tpu_custom_call.1} parent=47 // pred_check
          %p299 = pneg %p83
        $region50: #{tpu_custom_call.1} parent=47 // pred_check_branch
          %301 = sbr.rel (%p299) target = $region52
        $region51: #{tpu_custom_call.1} parent=47 // pred_region
          %302 = dma.done %s295, 2048
        $region52: #{tpu_custom_call.1} parent=47 // pred_fallthru
          _
        %s303 = smul.u32 16, %s29
        %p304 = scmp.lt.s32.totalorder %s303, 15
        %s305 = scalar_select %p304, %s303, 15
        %s306 = smul.addr %s305, 8
        %s307 = scalar_lea.vmem %s0, %s306
        %p308 = pneg %p57
        %p309 = pneg %p54
        %s310 = sand.u32 %s70, 1
        %s311 = scalar_lea.sflag [#allocation3], %s310
        %s312 = sand.u32 %s70, 1
        %s313 = smul.addr %s312, 128
        %s314 = scalar_lea.vmem [#allocation2], %s313
        %p315 = pneg %p83
        %p316 = pneg %p80
        %p317 = scmp.lt.s32.totalorder %s28, 2
        %s318 = scalar_select %p317, %s28, 2
        %s319 = scalar_lea.vmem %s2, %s318
        %p320 = pneg %p109
        %p321 = pneg %p106
        %p322 = pneg %p130
        %p323 = pneg %p127
        %p324 = pneg %p151
        %p325 = pneg %p148
        %p326 = pneg %p172
        %p327 = pneg %p169
        %p328 = pneg %p193
        %p329 = pneg %p190
        %p330 = pneg %p221
        %p331 = pneg %p218
        %s332 = sand.u32 %s208, 1
        %s333 = scalar_lea.sflag [#allocation4], %s332
        %s334 = sand.u32 %s208, 1
        %s335 = smul.addr %s334, 128
        %s336 = scalar_lea.vmem [#allocation5], %s335
        %s337 = smul.u32 16, %s29
        %p338 = scmp.lt.s32.totalorder %s337, 15
        %s339 = scalar_select %p338, %s337, 15
        %s340 = smul.addr %s339, 8
        %s341 = scalar_lea.vmem %s0, %s340
        %s342 = smul.u32 16, %s29
        %p343 = scmp.lt.s32.totalorder %s28, 2
        %s344 = scalar_select %p343, %s28, 2
        %s345 = scalar_lea.vmem %s2, %s344
        %s346 = smul.u32 16, %s29
        %v347 = vld [vmem:[%s341] sm:$0xff]
        %v348 = vld [vmem:[%s341 + $0x8] sm:$0xff]
        %v349 = vld [vmem:[%s341 + $0x10] sm:$0xff]
        %v350 = vld [vmem:[%s341 + $0x18] sm:$0xff]
        %v351 = vld [vmem:[%s341 + $0x20] sm:$0xff]
        %v352 = vld [vmem:[%s341 + $0x28] sm:$0xff]
        %v353 = vld [vmem:[%s341 + $0x30] sm:$0xff]
        %v354 = vld [vmem:[%s341 + $0x38] sm:$0xff]
        %v355 = vld [vmem:[%s341 + $0x40] sm:$0xff]
        %v356 = vld [vmem:[%s341 + $0x48] sm:$0xff]
        %v357 = vld [vmem:[%s341 + $0x50] sm:$0xff]
        %v358 = vld [vmem:[%s341 + $0x58] sm:$0xff]
        %v359 = vld [vmem:[%s341 + $0x60] sm:$0xff]
        %v360 = vld [vmem:[%s341 + $0x68] sm:$0xff]
        %v361 = vld [vmem:[%s341 + $0x70] sm:$0xff]
        %v362 = vld [vmem:[%s341 + $0x78] sm:$0xff]
        %v363 = vld [vmem:[%s298] sm:$0xff]
        %v364 = vld [vmem:[%s298 + $0x8] sm:$0xff]
        %v365 = vld [vmem:[%s298 + $0x10] sm:$0xff]
        %v366 = vld [vmem:[%s298 + $0x18] sm:$0xff]
        %v367 = vld [vmem:[%s298 + $0x20] sm:$0xff]
        %v368 = vld [vmem:[%s298 + $0x28] sm:$0xff]
        %v369 = vld [vmem:[%s298 + $0x30] sm:$0xff]
        %v370 = vld [vmem:[%s298 + $0x38] sm:$0xff]
        %v371 = vld [vmem:[%s298 + $0x40] sm:$0xff]
        %v372 = vld [vmem:[%s298 + $0x48] sm:$0xff]
        %v373 = vld [vmem:[%s298 + $0x50] sm:$0xff]
        %v374 = vld [vmem:[%s298 + $0x58] sm:$0xff]
        %v375 = vld [vmem:[%s298 + $0x60] sm:$0xff]
        %v376 = vld [vmem:[%s298 + $0x68] sm:$0xff]
        %v377 = vld [vmem:[%s298 + $0x70] sm:$0xff]
        %v378 = vld [vmem:[%s298 + $0x78] sm:$0xff]
        %v379 = vld [vmem:[%s345] sm:$0x1]
        %v381 = vlaneseq
        %v382 = vshrl.u32 %v381, 7
        %v383 = vsub.s32 0, %v382
        %v384 = vrot.slane %v379, %v383
        %386 = vmatprep.subr.mxu0 0.0
        %387 = vmatpush1.msra.mxu0 %v363
        %388 = vmatprep.subr.mxu0 0.0
        %389 = vmatpush1.msra.mxu0 %v364
        %390 = vmatprep.subr.mxu0 0.0
        %391 = vmatpush1.msra.mxu0 %v365
        %392 = vmatprep.subr.mxu0 0.0
        %393 = vmatpush1.msra.mxu0 %v366
        %394 = vmatprep.subr.mxu0 0.0
        %395 = vmatpush1.msra.mxu0 %v367
        %396 = vmatprep.subr.mxu0 0.0
        %397 = vmatpush1.msra.mxu0 %v368
        %398 = vmatprep.subr.mxu0 0.0
        %399 = vmatpush1.msra.mxu0 %v369
        %400 = vmatprep.subr.mxu0 0.0
        %401 = vmatpush1.msra.mxu0 %v370
        %402 = vmatprep.subr.mxu0 0.0
        %403 = vmatpush1.msra.mxu0 %v371
        %404 = vmatprep.subr.mxu0 0.0
        %405 = vmatpush1.msra.mxu0 %v372
        %406 = vmatprep.subr.mxu0 0.0
        %407 = vmatpush1.msra.mxu0 %v373
        %408 = vmatprep.subr.mxu0 0.0
        %409 = vmatpush1.msra.mxu0 %v374
        %410 = vmatprep.subr.mxu0 0.0
        %411 = vmatpush1.msra.mxu0 %v375
        %412 = vmatprep.subr.mxu0 0.0
        %413 = vmatpush1.msra.mxu0 %v376
        %414 = vmatprep.subr.mxu0 0.0
        %415 = vmatpush1.msra.mxu0 %v377
        %416 = vmatprep.subr.mxu0 0.0
        %417 = vmatpush1.msra.mxu0 %v378
        %418 = vmatprep.subr.mxu0 0.0
        %419 = vmatpush1.msra.mxu0 0.0
        %420 = vmatprep.subr.mxu0 0.0
        %421 = vmatpush1.msra.mxu0 0.0
        %422 = vmatprep.subr.mxu0 0.0
        %423 = vmatpush1.msra.mxu0 0.0
        %424 = vmatprep.subr.mxu0 0.0
        %425 = vmatpush1.msra.mxu0 0.0
        %426 = vmatprep.subr.mxu0 0.0
        %427 = vmatpush1.msra.mxu0 0.0
        %428 = vmatprep.subr.mxu0 0.0
        %429 = vmatpush1.msra.mxu0 0.0
        %430 = vmatprep.subr.mxu0 0.0
        %431 = vmatpush1.msra.mxu0 0.0
        %432 = vmatprep.subr.mxu0 0.0
        %433 = vmatpush1.msra.mxu0 0.0
        %434 = vmatprep.subr.mxu0 0.0
        %435 = vmatpush1.msra.mxu0 0.0
        %436 = vmatprep.subr.mxu0 0.0
        %437 = vmatpush1.msra.mxu0 0.0
        %438 = vmatprep.subr.mxu0 0.0
        %439 = vmatpush1.msra.mxu0 0.0
        %440 = vmatprep.subr.mxu0 0.0
        %441 = vmatpush1.msra.mxu0 0.0
        %442 = vmatprep.subr.mxu0 0.0
        %443 = vmatpush1.msra.mxu0 0.0
        %444 = vmatprep.subr.mxu0 0.0
        %445 = vmatpush1.msra.mxu0 0.0
        %446 = vmatprep.subr.mxu0 0.0
        %447 = vmatpush1.msra.mxu0 0.0
        %448 = vmatprep.subr.mxu0 0.0
        %449 = vmatpush1.msra.mxu0 0.0
        %450 = vmatprep.mubr.f32.mxu0 0.0
        %451 = vmatmul.mubr.f32.gmra.mrb[0].mxu0 %v347
        %v452 = vpop.f32.mrb[0].mxu0
        %v453 = vadd.f32 %v384, %v452
        %v454 = vpop.f32.mrb[0].mxu0
        %455 = vmatprep.mubr.f32.mxu0 0.0
        %456 = vmatmul.mubr.f32.gmra.mrb[0].mxu0 %v348
        %v457 = vpop.f32.mrb[0].mxu0
        %v458 = vadd.f32 %v384, %v457
        %v459 = vpop.f32.mrb[0].mxu0
        %460 = vmatprep.mubr.f32.mxu0 0.0
        %461 = vmatmul.mubr.f32.gmra.mrb[0].mxu0 %v349
        %v462 = vpop.f32.mrb[0].mxu0
        %v463 = vadd.f32 %v384, %v462
        %v464 = vpop.f32.mrb[0].mxu0
        %465 = vmatprep.mubr.f32.mxu0 0.0
        %466 = vmatmul.mubr.f32.gmra.mrb[0].mxu0 %v350
        %v467 = vpop.f32.mrb[0].mxu0
        %v468 = vadd.f32 %v384, %v467
        %v469 = vpop.f32.mrb[0].mxu0
        %470 = vmatprep.mubr.f32.mxu0 0.0
        %471 = vmatmul.mubr.f32.gmra.mrb[0].mxu0 %v351
        %v472 = vpop.f32.mrb[0].mxu0
        %v473 = vadd.f32 %v384, %v472
        %v474 = vpop.f32.mrb[0].mxu0
        %475 = vmatprep.mubr.f32.mxu0 0.0
        %476 = vmatmul.mubr.f32.gmra.mrb[0].mxu0 %v352
        %v477 = vpop.f32.mrb[0].mxu0
        %v478 = vadd.f32 %v384, %v477
        %v479 = vpop.f32.mrb[0].mxu0
        %480 = vmatprep.mubr.f32.mxu0 0.0
        %481 = vmatmul.mubr.f32.gmra.mrb[0].mxu0 %v353
        %v482 = vpop.f32.mrb[0].mxu0
        %v483 = vadd.f32 %v384, %v482
        %v484 = vpop.f32.mrb[0].mxu0
        %485 = vmatprep.mubr.f32.mxu0 0.0
        %486 = vmatmul.mubr.f32.gmra.mrb[0].mxu0 %v354
        %v487 = vpop.f32.mrb[0].mxu0
        %v488 = vadd.f32 %v384, %v487
        %v489 = vpop.f32.mrb[0].mxu0
        %490 = vmatprep.mubr.f32.mxu0 0.0
        %491 = vmatmul.mubr.f32.gmra.mrb[0].mxu0 %v355
        %v492 = vpop.f32.mrb[0].mxu0
        %v493 = vadd.f32 %v384, %v492
        %v494 = vpop.f32.mrb[0].mxu0
        %495 = vmatprep.mubr.f32.mxu0 0.0
        %496 = vmatmul.mubr.f32.gmra.mrb[0].mxu0 %v356
        %v497 = vpop.f32.mrb[0].mxu0
        %v498 = vadd.f32 %v384, %v497
        %v499 = vpop.f32.mrb[0].mxu0
        %500 = vmatprep.mubr.f32.mxu0 0.0
        %501 = vmatmul.mubr.f32.gmra.mrb[0].mxu0 %v357
        %v502 = vpop.f32.mrb[0].mxu0
        %v503 = vadd.f32 %v384, %v502
        %v504 = vpop.f32.mrb[0].mxu0
        %505 = vmatprep.mubr.f32.mxu0 0.0
        %506 = vmatmul.mubr.f32.gmra.mrb[0].mxu0 %v358
        %v507 = vpop.f32.mrb[0].mxu0
        %v508 = vadd.f32 %v384, %v507
        %v509 = vpop.f32.mrb[0].mxu0
        %510 = vmatprep.mubr.f32.mxu0 0.0
        %511 = vmatmul.mubr.f32.gmra.mrb[0].mxu0 %v359
        %v512 = vpop.f32.mrb[0].mxu0
        %v513 = vadd.f32 %v384, %v512
        %v514 = vpop.f32.mrb[0].mxu0
        %515 = vmatprep.mubr.f32.mxu0 0.0
        %516 = vmatmul.mubr.f32.gmra.mrb[0].mxu0 %v360
        %v517 = vpop.f32.mrb[0].mxu0
        %v518 = vadd.f32 %v384, %v517
        %v519 = vpop.f32.mrb[0].mxu0
        %520 = vmatprep.mubr.f32.mxu0 0.0
        %521 = vmatmul.mubr.f32.gmra.mrb[0].mxu0 %v361
        %v522 = vpop.f32.mrb[0].mxu0
        %v523 = vadd.f32 %v384, %v522
        %v524 = vpop.f32.mrb[0].mxu0
        %525 = vmatprep.mubr.f32.mxu0 0.0
        %526 = vmatmul.mubr.f32.gmra.mrb[0].mxu0 %v362
        %v527 = vpop.f32.mrb[0].mxu0
        %v528 = vadd.f32 %v384, %v527
        %v529 = vpop.f32.mrb[0].mxu0
        %530 = vdwg.mxu0
        %531 = vst [vmem:[%s336] sm:$0xff] %v453
        %532 = vst [vmem:[%s336 + $0x8] sm:$0xff] %v458
        %533 = vst [vmem:[%s336 + $0x10] sm:$0xff] %v463
        %534 = vst [vmem:[%s336 + $0x18] sm:$0xff] %v468
        %535 = vst [vmem:[%s336 + $0x20] sm:$0xff] %v473
        %536 = vst [vmem:[%s336 + $0x28] sm:$0xff] %v478
        %537 = vst [vmem:[%s336 + $0x30] sm:$0xff] %v483
        %538 = vst [vmem:[%s336 + $0x38] sm:$0xff] %v488
        %539 = vst [vmem:[%s336 + $0x40] sm:$0xff] %v493
        %540 = vst [vmem:[%s336 + $0x48] sm:$0xff] %v498
        %541 = vst [vmem:[%s336 + $0x50] sm:$0xff] %v503
        %542 = vst [vmem:[%s336 + $0x58] sm:$0xff] %v508
        %543 = vst [vmem:[%s336 + $0x60] sm:$0xff] %v513
        %544 = vst [vmem:[%s336 + $0x68] sm:$0xff] %v518
        %545 = vst [vmem:[%s336 + $0x70] sm:$0xff] %v523
        %546 = vst [vmem:[%s336 + $0x78] sm:$0xff] %v528
        %p547 = scmp.eq.s32.totalorder %s28, 0
        // Predicated region
        $region53: #{tpu_custom_call.1} parent=47 // pred_check
          %p548 = pneg %p547
        $region54: #{tpu_custom_call.1} parent=47 // pred_check_branch
          %550 = sbr.rel (%p548) target = $region56
        $region55: #{tpu_custom_call.1} parent=47 // pred_region
          %v551 = vld [vmem:[%s3] sm:$0xff]
          %v552 = vld [vmem:[%s3 + $0x8] sm:$0xff]
          %v553 = vld [vmem:[%s3 + $0x10] sm:$0xff]
          %v554 = vld [vmem:[%s3 + $0x18] sm:$0xff]
          %v555 = vld [vmem:[%s3 + $0x20] sm:$0xff]
          %v556 = vld [vmem:[%s3 + $0x28] sm:$0xff]
          %v557 = vld [vmem:[%s3 + $0x30] sm:$0xff]
          %v558 = vld [vmem:[%s3 + $0x38] sm:$0xff]
          %v559 = vld [vmem:[%s3 + $0x40] sm:$0xff]
          %v560 = vld [vmem:[%s3 + $0x48] sm:$0xff]
          %v561 = vld [vmem:[%s3 + $0x50] sm:$0xff]
          %v562 = vld [vmem:[%s3 + $0x58] sm:$0xff]
          %v563 = vld [vmem:[%s3 + $0x60] sm:$0xff]
          %v564 = vld [vmem:[%s3 + $0x68] sm:$0xff]
          %v565 = vld [vmem:[%s3 + $0x70] sm:$0xff]
          %v566 = vld [vmem:[%s3 + $0x78] sm:$0xff]
          %567 = vmatprep.subr.mxu0 0.0
          %568 = vmatpush1.msra.mxu0 %v551
          %569 = vmatprep.subr.mxu0 0.0
          %570 = vmatpush1.msra.mxu0 %v552
          %571 = vmatprep.subr.mxu0 0.0
          %572 = vmatpush1.msra.mxu0 %v553
          %573 = vmatprep.subr.mxu0 0.0
          %574 = vmatpush1.msra.mxu0 %v554
          %575 = vmatprep.subr.mxu0 0.0
          %576 = vmatpush1.msra.mxu0 %v555
          %577 = vmatprep.subr.mxu0 0.0
          %578 = vmatpush1.msra.mxu0 %v556
          %579 = vmatprep.subr.mxu0 0.0
          %580 = vmatpush1.msra.mxu0 %v557
          %581 = vmatprep.subr.mxu0 0.0
          %582 = vmatpush1.msra.mxu0 %v558
          %583 = vmatprep.subr.mxu0 0.0
          %584 = vmatpush1.msra.mxu0 %v559
          %585 = vmatprep.subr.mxu0 0.0
          %586 = vmatpush1.msra.mxu0 %v560
          %587 = vmatprep.subr.mxu0 0.0
          %588 = vmatpush1.msra.mxu0 %v561
          %589 = vmatprep.subr.mxu0 0.0
          %590 = vmatpush1.msra.mxu0 %v562
          %591 = vmatprep.subr.mxu0 0.0
          %592 = vmatpush1.msra.mxu0 %v563
          %593 = vmatprep.subr.mxu0 0.0
          %594 = vmatpush1.msra.mxu0 %v564
          %595 = vmatprep.subr.mxu0 0.0
          %596 = vmatpush1.msra.mxu0 %v565
          %597 = vmatprep.subr.mxu0 0.0
          %598 = vmatpush1.msra.mxu0 %v566
          %599 = vmatprep.subr.mxu0 0.0
          %600 = vmatpush1.msra.mxu0 0.0
          %601 = vmatprep.subr.mxu0 0.0
          %602 = vmatpush1.msra.mxu0 0.0
          %603 = vmatprep.subr.mxu0 0.0
          %604 = vmatpush1.msra.mxu0 0.0
          %605 = vmatprep.subr.mxu0 0.0
          %606 = vmatpush1.msra.mxu0 0.0
          %607 = vmatprep.subr.mxu0 0.0
          %608 = vmatpush1.msra.mxu0 0.0
          %609 = vmatprep.subr.mxu0 0.0
          %610 = vmatpush1.msra.mxu0 0.0
          %611 = vmatprep.subr.mxu0 0.0
          %612 = vmatpush1.msra.mxu0 0.0
          %613 = vmatprep.subr.mxu0 0.0
          %614 = vmatpush1.msra.mxu0 0.0
          %615 = vmatprep.subr.mxu0 0.0
          %616 = vmatpush1.msra.mxu0 0.0
          %617 = vmatprep.subr.mxu0 0.0
          %618 = vmatpush1.msra.mxu0 0.0
          %619 = vmatprep.subr.mxu0 0.0
          %620 = vmatpush1.msra.mxu0 0.0
          %621 = vmatprep.subr.mxu0 0.0
          %622 = vmatpush1.msra.mxu0 0.0
          %623 = vmatprep.subr.mxu0 0.0
          %624 = vmatpush1.msra.mxu0 0.0
          %625 = vmatprep.subr.mxu0 0.0
          %626 = vmatpush1.msra.mxu0 0.0
          %627 = vmatprep.subr.mxu0 0.0
          %628 = vmatpush1.msra.mxu0 0.0
          %629 = vmatprep.subr.mxu0 0.0
          %630 = vmatpush1.msra.mxu0 0.0
          %631 = vmatprep.mubr.f32.mxu0 0.0
          %632 = vmatmul.mubr.f32.gmra.mrb[0].mxu0 %v347
          %v633 = vpop.f32.mrb[0].mxu0
          %v634 = vadd.f32 0.0, %v633
          %v635 = vpop.f32.mrb[0].mxu0
          %636 = vmatprep.mubr.f32.mxu0 0.0
          %637 = vmatmul.mubr.f32.gmra.mrb[0].mxu0 %v348
          %v638 = vpop.f32.mrb[0].mxu0
          %v639 = vadd.f32 0.0, %v638
          %v640 = vpop.f32.mrb[0].mxu0
          %641 = vmatprep.mubr.f32.mxu0 0.0
          %642 = vmatmul.mubr.f32.gmra.mrb[0].mxu0 %v349
          %v643 = vpop.f32.mrb[0].mxu0
          %v644 = vadd.f32 0.0, %v643
          %v645 = vpop.f32.mrb[0].mxu0
          %646 = vmatprep.mubr.f32.mxu0 0.0
          %647 = vmatmul.mubr.f32.gmra.mrb[0].mxu0 %v350
          %v648 = vpop.f32.mrb[0].mxu0
          %v649 = vadd.f32 0.0, %v648
          %v650 = vpop.f32.mrb[0].mxu0
          %651 = vmatprep.mubr.f32.mxu0 0.0
          %652 = vmatmul.mubr.f32.gmra.mrb[0].mxu0 %v351
          %v653 = vpop.f32.mrb[0].mxu0
          %v654 = vadd.f32 0.0, %v653
          %v655 = vpop.f32.mrb[0].mxu0
          %656 = vmatprep.mubr.f32.mxu0 0.0
          %657 = vmatmul.mubr.f32.gmra.mrb[0].mxu0 %v352
          %v658 = vpop.f32.mrb[0].mxu0
          %v659 = vadd.f32 0.0, %v658
          %v660 = vpop.f32.mrb[0].mxu0
          %661 = vmatprep.mubr.f32.mxu0 0.0
          %662 = vmatmul.mubr.f32.gmra.mrb[0].mxu0 %v353
          %v663 = vpop.f32.mrb[0].mxu0
          %v664 = vadd.f32 0.0, %v663
          %v665 = vpop.f32.mrb[0].mxu0
          %666 = vmatprep.mubr.f32.mxu0 0.0
          %667 = vmatmul.mubr.f32.gmra.mrb[0].mxu0 %v354
          %v668 = vpop.f32.mrb[0].mxu0
          %v669 = vadd.f32 0.0, %v668
          %v670 = vpop.f32.mrb[0].mxu0
          %671 = vmatprep.mubr.f32.mxu0 0.0
          %672 = vmatmul.mubr.f32.gmra.mrb[0].mxu0 %v355
          %v673 = vpop.f32.mrb[0].mxu0
          %v674 = vadd.f32 0.0, %v673
          %v675 = vpop.f32.mrb[0].mxu0
          %676 = vmatprep.mubr.f32.mxu0 0.0
          %677 = vmatmul.mubr.f32.gmra.mrb[0].mxu0 %v356
          %v678 = vpop.f32.mrb[0].mxu0
          %v679 = vadd.f32 0.0, %v678
          %v680 = vpop.f32.mrb[0].mxu0
          %681 = vmatprep.mubr.f32.mxu0 0.0
          %682 = vmatmul.mubr.f32.gmra.mrb[0].mxu0 %v357
          %v683 = vpop.f32.mrb[0].mxu0
          %v684 = vadd.f32 0.0, %v683
          %v685 = vpop.f32.mrb[0].mxu0
          %686 = vmatprep.mubr.f32.mxu0 0.0
          %687 = vmatmul.mubr.f32.gmra.mrb[0].mxu0 %v358
          %v688 = vpop.f32.mrb[0].mxu0
          %v689 = vadd.f32 0.0, %v688
          %v690 = vpop.f32.mrb[0].mxu0
          %691 = vmatprep.mubr.f32.mxu0 0.0
          %692 = vmatmul.mubr.f32.gmra.mrb[0].mxu0 %v359
          %v693 = vpop.f32.mrb[0].mxu0
          %v694 = vadd.f32 0.0, %v693
          %v695 = vpop.f32.mrb[0].mxu0
          %696 = vmatprep.mubr.f32.mxu0 0.0
          %697 = vmatmul.mubr.f32.gmra.mrb[0].mxu0 %v360
          %v698 = vpop.f32.mrb[0].mxu0
          %v699 = vadd.f32 0.0, %v698
          %v700 = vpop.f32.mrb[0].mxu0
          %701 = vmatprep.mubr.f32.mxu0 0.0
          %702 = vmatmul.mubr.f32.gmra.mrb[0].mxu0 %v361
          %v703 = vpop.f32.mrb[0].mxu0
          %v704 = vadd.f32 0.0, %v703
          %v705 = vpop.f32.mrb[0].mxu0
          %706 = vmatprep.mubr.f32.mxu0 0.0
          %707 = vmatmul.mubr.f32.gmra.mrb[0].mxu0 %v362
          %v708 = vpop.f32.mrb[0].mxu0
          %v709 = vadd.f32 0.0, %v708
          %v710 = vpop.f32.mrb[0].mxu0
          %711 = vdwg.mxu0
          %v712 = vld [vmem:[%s4] sm:$0xf]
          %vm713 = vcmask 31744
          %v715 = vsel %vm713, %v634, 0
          %v718 = vsel %vm713, %v639, 0
          %v721 = vsel %vm713, %v644, 0
          %v724 = vsel %vm713, %v649, 0
          %v727 = vsel %vm713, %v654, 0
          %v730 = vsel %vm713, %v659, 0
          %v733 = vsel %vm713, %v664, 0
          %v736 = vsel %vm713, %v669, 0
          %v739 = vsel %vm713, %v674, 0
          %v742 = vsel %vm713, %v679, 0
          %v745 = vsel %vm713, %v684, 0
          %v748 = vsel %vm713, %v689, 0
          %v751 = vsel %vm713, %v694, 0
          %v754 = vsel %vm713, %v699, 0
          %v757 = vsel %vm713, %v704, 0
          %v760 = vsel %vm713, %v709, 0
          %vm762 = vcmask 1043456
          %v764 = vsel %vm762, %v712, 0
          %766 = vmatprep.subr.mxu0 0.0
          %767 = vmatpush1.msra.mxu0 %v764
          %768 = vmatprep.subr.mxu0 0.0
          %769 = vmatpush1.msra.mxu0 0.0
          %770 = vmatprep.subr.mxu0 0.0
          %771 = vmatpush1.msra.mxu0 0.0
          %772 = vmatprep.subr.mxu0 0.0
          %773 = vmatpush1.msra.mxu0 0.0
          %774 = vmatprep.subr.mxu0 0.0
          %775 = vmatpush1.msra.mxu0 0.0
          %776 = vmatprep.subr.mxu0 0.0
          %777 = vmatpush1.msra.mxu0 0.0
          %778 = vmatprep.subr.mxu0 0.0
          %779 = vmatpush1.msra.mxu0 0.0
          %780 = vmatprep.subr.mxu0 0.0
          %781 = vmatpush1.msra.mxu0 0.0
          %782 = vmatprep.subr.mxu0 0.0
          %783 = vmatpush1.msra.mxu0 0.0
          %784 = vmatprep.subr.mxu0 0.0
          %785 = vmatpush1.msra.mxu0 0.0
          %786 = vmatprep.subr.mxu0 0.0
          %787 = vmatpush1.msra.mxu0 0.0
          %788 = vmatprep.subr.mxu0 0.0
          %789 = vmatpush1.msra.mxu0 0.0
          %790 = vmatprep.subr.mxu0 0.0
          %791 = vmatpush1.msra.mxu0 0.0
          %792 = vmatprep.subr.mxu0 0.0
          %793 = vmatpush1.msra.mxu0 0.0
          %794 = vmatprep.subr.mxu0 0.0
          %795 = vmatpush1.msra.mxu0 0.0
          %796 = vmatprep.subr.mxu0 0.0
          %797 = vmatpush1.msra.mxu0 0.0
          %798 = vmatprep.subr.mxu0 0.0
          %799 = vmatpush1.msra.mxu0 0.0
          %800 = vmatprep.subr.mxu0 0.0
          %801 = vmatpush1.msra.mxu0 0.0
          %802 = vmatprep.subr.mxu0 0.0
          %803 = vmatpush1.msra.mxu0 0.0
          %804 = vmatprep.subr.mxu0 0.0
          %805 = vmatpush1.msra.mxu0 0.0
          %806 = vmatprep.subr.mxu0 0.0
          %807 = vmatpush1.msra.mxu0 0.0
          %808 = vmatprep.subr.mxu0 0.0
          %809 = vmatpush1.msra.mxu0 0.0
          %810 = vmatprep.subr.mxu0 0.0
          %811 = vmatpush1.msra.mxu0 0.0
          %812 = vmatprep.subr.mxu0 0.0
          %813 = vmatpush1.msra.mxu0 0.0
          %814 = vmatprep.subr.mxu0 0.0
          %815 = vmatpush1.msra.mxu0 0.0
          %816 = vmatprep.subr.mxu0 0.0
          %817 = vmatpush1.msra.mxu0 0.0
          %818 = vmatprep.subr.mxu0 0.0
          %819 = vmatpush1.msra.mxu0 0.0
          %820 = vmatprep.subr.mxu0 0.0
          %821 = vmatpush1.msra.mxu0 0.0
          %822 = vmatprep.subr.mxu0 0.0
          %823 = vmatpush1.msra.mxu0 0.0
          %824 = vmatprep.subr.mxu0 0.0
          %825 = vmatpush1.msra.mxu0 0.0
          %826 = vmatprep.subr.mxu0 0.0
          %827 = vmatpush1.msra.mxu0 0.0
          %828 = vmatprep.subr.mxu0 0.0
          %829 = vmatpush1.msra.mxu0 0.0
          %830 = vmatprep.mubr.f32.mxu0 0.0
          %831 = vmatmul.mubr.f32.gmra.mrb[0].mxu0 %v715
          %v832 = vpop.f32.mrb[0].mxu0
          %v833 = vadd.f32 0.0, %v832
          %v834 = vpop.f32.mrb[0].mxu0
          %835 = vmatprep.mubr.f32.mxu0 0.0
          %836 = vmatmul.mubr.f32.gmra.mrb[0].mxu0 %v718
          %v837 = vpop.f32.mrb[0].mxu0
          %v838 = vadd.f32 0.0, %v837
          %v839 = vpop.f32.mrb[0].mxu0
          %840 = vmatprep.mubr.f32.mxu0 0.0
          %841 = vmatmul.mubr.f32.gmra.mrb[0].mxu0 %v721
          %v842 = vpop.f32.mrb[0].mxu0
          %v843 = vadd.f32 0.0, %v842
          %v844 = vpop.f32.mrb[0].mxu0
          %845 = vmatprep.mubr.f32.mxu0 0.0
          %846 = vmatmul.mubr.f32.gmra.mrb[0].mxu0 %v724
          %v847 = vpop.f32.mrb[0].mxu0
          %v848 = vadd.f32 0.0, %v847
          %v849 = vpop.f32.mrb[0].mxu0
          %850 = vmatprep.mubr.f32.mxu0 0.0
          %851 = vmatmul.mubr.f32.gmra.mrb[0].mxu0 %v727
          %v852 = vpop.f32.mrb[0].mxu0
          %v853 = vadd.f32 0.0, %v852
          %v854 = vpop.f32.mrb[0].mxu0
          %855 = vmatprep.mubr.f32.mxu0 0.0
          %856 = vmatmul.mubr.f32.gmra.mrb[0].mxu0 %v730
          %v857 = vpop.f32.mrb[0].mxu0
          %v858 = vadd.f32 0.0, %v857
          %v859 = vpop.f32.mrb[0].mxu0
          %860 = vmatprep.mubr.f32.mxu0 0.0
          %861 = vmatmul.mubr.f32.gmra.mrb[0].mxu0 %v733
          %v862 = vpop.f32.mrb[0].mxu0
          %v863 = vadd.f32 0.0, %v862
          %v864 = vpop.f32.mrb[0].mxu0
          %865 = vmatprep.mubr.f32.mxu0 0.0
          %866 = vmatmul.mubr.f32.gmra.mrb[0].mxu0 %v736
          %v867 = vpop.f32.mrb[0].mxu0
          %v868 = vadd.f32 0.0, %v867
          %v869 = vpop.f32.mrb[0].mxu0
          %870 = vmatprep.mubr.f32.mxu0 0.0
          %871 = vmatmul.mubr.f32.gmra.mrb[0].mxu0 %v739
          %v872 = vpop.f32.mrb[0].mxu0
          %v873 = vadd.f32 0.0, %v872
          %v874 = vpop.f32.mrb[0].mxu0
          %875 = vmatprep.mubr.f32.mxu0 0.0
          %876 = vmatmul.mubr.f32.gmra.mrb[0].mxu0 %v742
          %v877 = vpop.f32.mrb[0].mxu0
          %v878 = vadd.f32 0.0, %v877
          %v879 = vpop.f32.mrb[0].mxu0
          %880 = vmatprep.mubr.f32.mxu0 0.0
          %881 = vmatmul.mubr.f32.gmra.mrb[0].mxu0 %v745
          %v882 = vpop.f32.mrb[0].mxu0
          %v883 = vadd.f32 0.0, %v882
          %v884 = vpop.f32.mrb[0].mxu0
          %885 = vmatprep.mubr.f32.mxu0 0.0
          %886 = vmatmul.mubr.f32.gmra.mrb[0].mxu0 %v748
          %v887 = vpop.f32.mrb[0].mxu0
          %v888 = vadd.f32 0.0, %v887
          %v889 = vpop.f32.mrb[0].mxu0
          %890 = vmatprep.mubr.f32.mxu0 0.0
          %891 = vmatmul.mubr.f32.gmra.mrb[0].mxu0 %v751
          %v892 = vpop.f32.mrb[0].mxu0
          %v893 = vadd.f32 0.0, %v892
          %v894 = vpop.f32.mrb[0].mxu0
          %895 = vmatprep.mubr.f32.mxu0 0.0
          %896 = vmatmul.mubr.f32.gmra.mrb[0].mxu0 %v754
          %v897 = vpop.f32.mrb[0].mxu0
          %v898 = vadd.f32 0.0, %v897
          %v899 = vpop.f32.mrb[0].mxu0
          %900 = vmatprep.mubr.f32.mxu0 0.0
          %901 = vmatmul.mubr.f32.gmra.mrb[0].mxu0 %v757
          %v902 = vpop.f32.mrb[0].mxu0
          %v903 = vadd.f32 0.0, %v902
          %v904 = vpop.f32.mrb[0].mxu0
          %905 = vmatprep.mubr.f32.mxu0 0.0
          %906 = vmatmul.mubr.f32.gmra.mrb[0].mxu0 %v760
          %v907 = vpop.f32.mrb[0].mxu0
          %v908 = vadd.f32 0.0, %v907
          %v909 = vpop.f32.mrb[0].mxu0
          %910 = vdwg.mxu0
          %v911 = vld [vmem:[%s336] sm:$0xff]
          %v912 = vld [vmem:[%s336 + $0x8] sm:$0xff]
          %v913 = vld [vmem:[%s336 + $0x10] sm:$0xff]
          %v914 = vld [vmem:[%s336 + $0x18] sm:$0xff]
          %v915 = vld [vmem:[%s336 + $0x20] sm:$0xff]
          %v916 = vld [vmem:[%s336 + $0x28] sm:$0xff]
          %v917 = vld [vmem:[%s336 + $0x30] sm:$0xff]
          %v918 = vld [vmem:[%s336 + $0x38] sm:$0xff]
          %v919 = vld [vmem:[%s336 + $0x40] sm:$0xff]
          %v920 = vld [vmem:[%s336 + $0x48] sm:$0xff]
          %v921 = vld [vmem:[%s336 + $0x50] sm:$0xff]
          %v922 = vld [vmem:[%s336 + $0x58] sm:$0xff]
          %v923 = vld [vmem:[%s336 + $0x60] sm:$0xff]
          %v924 = vld [vmem:[%s336 + $0x68] sm:$0xff]
          %v925 = vld [vmem:[%s336 + $0x70] sm:$0xff]
          %v926 = vld [vmem:[%s336 + $0x78] sm:$0xff]
          %v927 = vadd.f32 %v911, %v833
          %v928 = vadd.f32 %v912, %v838
          %v929 = vadd.f32 %v913, %v843
          %v930 = vadd.f32 %v914, %v848
          %v931 = vadd.f32 %v915, %v853
          %v932 = vadd.f32 %v916, %v858
          %v933 = vadd.f32 %v917, %v863
          %v934 = vadd.f32 %v918, %v868
          %v935 = vadd.f32 %v919, %v873
          %v936 = vadd.f32 %v920, %v878
          %v937 = vadd.f32 %v921, %v883
          %v938 = vadd.f32 %v922, %v888
          %v939 = vadd.f32 %v923, %v893
          %v940 = vadd.f32 %v924, %v898
          %v941 = vadd.f32 %v925, %v903
          %v942 = vadd.f32 %v926, %v908
          %943 = vst [vmem:[%s336] sm:$0xff] %v927
          %944 = vst [vmem:[%s336 + $0x8] sm:$0xff] %v928
          %945 = vst [vmem:[%s336 + $0x10] sm:$0xff] %v929
          %946 = vst [vmem:[%s336 + $0x18] sm:$0xff] %v930
          %947 = vst [vmem:[%s336 + $0x20] sm:$0xff] %v931
          %948 = vst [vmem:[%s336 + $0x28] sm:$0xff] %v932
          %949 = vst [vmem:[%s336 + $0x30] sm:$0xff] %v933
          %950 = vst [vmem:[%s336 + $0x38] sm:$0xff] %v934
          %951 = vst [vmem:[%s336 + $0x40] sm:$0xff] %v935
          %952 = vst [vmem:[%s336 + $0x48] sm:$0xff] %v936
          %953 = vst [vmem:[%s336 + $0x50] sm:$0xff] %v937
          %954 = vst [vmem:[%s336 + $0x58] sm:$0xff] %v938
          %955 = vst [vmem:[%s336 + $0x60] sm:$0xff] %v939
          %956 = vst [vmem:[%s336 + $0x68] sm:$0xff] %v940
          %957 = vst [vmem:[%s336 + $0x70] sm:$0xff] %v941
          %958 = vst [vmem:[%s336 + $0x78] sm:$0xff] %v942
        $region56: #{tpu_custom_call.1} parent=47 // pred_fallthru
          _
        %p959 = scmp.eq.s32.totalorder %s28, 2
        // Predicated region
        $region57: #{tpu_custom_call.1} parent=47 // pred_check
          %p960 = pneg %p959
        $region58: #{tpu_custom_call.1} parent=47 // pred_check_branch
          %962 = sbr.rel (%p960) target = $region60
        $region59: #{tpu_custom_call.1} parent=47 // pred_region
          %v963 = vld [vmem:[%s5] sm:$0xff]
          %v964 = vld [vmem:[%s5 + $0x8] sm:$0xff]
          %v965 = vld [vmem:[%s5 + $0x10] sm:$0xff]
          %v966 = vld [vmem:[%s5 + $0x18] sm:$0xff]
          %v967 = vld [vmem:[%s5 + $0x20] sm:$0xff]
          %v968 = vld [vmem:[%s5 + $0x28] sm:$0xff]
          %v969 = vld [vmem:[%s5 + $0x30] sm:$0xff]
          %v970 = vld [vmem:[%s5 + $0x38] sm:$0xff]
          %v971 = vld [vmem:[%s5 + $0x40] sm:$0xff]
          %v972 = vld [vmem:[%s5 + $0x48] sm:$0xff]
          %v973 = vld [vmem:[%s5 + $0x50] sm:$0xff]
          %v974 = vld [vmem:[%s5 + $0x58] sm:$0xff]
          %v975 = vld [vmem:[%s5 + $0x60] sm:$0xff]
          %v976 = vld [vmem:[%s5 + $0x68] sm:$0xff]
          %v977 = vld [vmem:[%s5 + $0x70] sm:$0xff]
          %v978 = vld [vmem:[%s5 + $0x78] sm:$0xff]
          %979 = vmatprep.subr.mxu0 0.0
          %980 = vmatpush1.msra.mxu0 %v963
          %981 = vmatprep.subr.mxu0 0.0
          %982 = vmatpush1.msra.mxu0 %v964
          %983 = vmatprep.subr.mxu0 0.0
          %984 = vmatpush1.msra.mxu0 %v965
          %985 = vmatprep.subr.mxu0 0.0
          %986 = vmatpush1.msra.mxu0 %v966
          %987 = vmatprep.subr.mxu0 0.0
          %988 = vmatpush1.msra.mxu0 %v967
          %989 = vmatprep.subr.mxu0 0.0
          %990 = vmatpush1.msra.mxu0 %v968
          %991 = vmatprep.subr.mxu0 0.0
          %992 = vmatpush1.msra.mxu0 %v969
          %993 = vmatprep.subr.mxu0 0.0
          %994 = vmatpush1.msra.mxu0 %v970
          %995 = vmatprep.subr.mxu0 0.0
          %996 = vmatpush1.msra.mxu0 %v971
          %997 = vmatprep.subr.mxu0 0.0
          %998 = vmatpush1.msra.mxu0 %v972
          %999 = vmatprep.subr.mxu0 0.0
          %1000 = vmatpush1.msra.mxu0 %v973
          %1001 = vmatprep.subr.mxu0 0.0
          %1002 = vmatpush1.msra.mxu0 %v974
          %1003 = vmatprep.subr.mxu0 0.0
          %1004 = vmatpush1.msra.mxu0 %v975
          %1005 = vmatprep.subr.mxu0 0.0
          %1006 = vmatpush1.msra.mxu0 %v976
          %1007 = vmatprep.subr.mxu0 0.0
          %1008 = vmatpush1.msra.mxu0 %v977
          %1009 = vmatprep.subr.mxu0 0.0
          %1010 = vmatpush1.msra.mxu0 %v978
          %1011 = vmatprep.subr.mxu0 0.0
          %1012 = vmatpush1.msra.mxu0 0.0
          %1013 = vmatprep.subr.mxu0 0.0
          %1014 = vmatpush1.msra.mxu0 0.0
          %1015 = vmatprep.subr.mxu0 0.0
          %1016 = vmatpush1.msra.mxu0 0.0
          %1017 = vmatprep.subr.mxu0 0.0
          %1018 = vmatpush1.msra.mxu0 0.0
          %1019 = vmatprep.subr.mxu0 0.0
          %1020 = vmatpush1.msra.mxu0 0.0
          %1021 = vmatprep.subr.mxu0 0.0
          %1022 = vmatpush1.msra.mxu0 0.0
          %1023 = vmatprep.subr.mxu0 0.0
          %1024 = vmatpush1.msra.mxu0 0.0
          %1025 = vmatprep.subr.mxu0 0.0
          %1026 = vmatpush1.msra.mxu0 0.0
          %1027 = vmatprep.subr.mxu0 0.0
          %1028 = vmatpush1.msra.mxu0 0.0
          %1029 = vmatprep.subr.mxu0 0.0
          %1030 = vmatpush1.msra.mxu0 0.0
          %1031 = vmatprep.subr.mxu0 0.0
          %1032 = vmatpush1.msra.mxu0 0.0
          %1033 = vmatprep.subr.mxu0 0.0
          %1034 = vmatpush1.msra.mxu0 0.0
          %1035 = vmatprep.subr.mxu0 0.0
          %1036 = vmatpush1.msra.mxu0 0.0
          %1037 = vmatprep.subr.mxu0 0.0
          %1038 = vmatpush1.msra.mxu0 0.0
          %1039 = vmatprep.subr.mxu0 0.0
          %1040 = vmatpush1.msra.mxu0 0.0
          %1041 = vmatprep.subr.mxu0 0.0
          %1042 = vmatpush1.msra.mxu0 0.0
          %1043 = vmatprep.mubr.f32.mxu0 0.0
          %1044 = vmatmul.mubr.f32.gmra.mrb[0].mxu0 %v347
          %v1045 = vpop.f32.mrb[0].mxu0
          %v1046 = vadd.f32 0.0, %v1045
          %v1047 = vpop.f32.mrb[0].mxu0
          %1048 = vmatprep.mubr.f32.mxu0 0.0
          %1049 = vmatmul.mubr.f32.gmra.mrb[0].mxu0 %v348
          %v1050 = vpop.f32.mrb[0].mxu0
          %v1051 = vadd.f32 0.0, %v1050
          %v1052 = vpop.f32.mrb[0].mxu0
          %1053 = vmatprep.mubr.f32.mxu0 0.0
          %1054 = vmatmul.mubr.f32.gmra.mrb[0].mxu0 %v349
          %v1055 = vpop.f32.mrb[0].mxu0
          %v1056 = vadd.f32 0.0, %v1055
          %v1057 = vpop.f32.mrb[0].mxu0
          %1058 = vmatprep.mubr.f32.mxu0 0.0
          %1059 = vmatmul.mubr.f32.gmra.mrb[0].mxu0 %v350
          %v1060 = vpop.f32.mrb[0].mxu0
          %v1061 = vadd.f32 0.0, %v1060
          %v1062 = vpop.f32.mrb[0].mxu0
          %1063 = vmatprep.mubr.f32.mxu0 0.0
          %1064 = vmatmul.mubr.f32.gmra.mrb[0].mxu0 %v351
          %v1065 = vpop.f32.mrb[0].mxu0
          %v1066 = vadd.f32 0.0, %v1065
          %v1067 = vpop.f32.mrb[0].mxu0
          %1068 = vmatprep.mubr.f32.mxu0 0.0
          %1069 = vmatmul.mubr.f32.gmra.mrb[0].mxu0 %v352
          %v1070 = vpop.f32.mrb[0].mxu0
          %v1071 = vadd.f32 0.0, %v1070
          %v1072 = vpop.f32.mrb[0].mxu0
          %1073 = vmatprep.mubr.f32.mxu0 0.0
          %1074 = vmatmul.mubr.f32.gmra.mrb[0].mxu0 %v353
          %v1075 = vpop.f32.mrb[0].mxu0
          %v1076 = vadd.f32 0.0, %v1075
          %v1077 = vpop.f32.mrb[0].mxu0
          %1078 = vmatprep.mubr.f32.mxu0 0.0
          %1079 = vmatmul.mubr.f32.gmra.mrb[0].mxu0 %v354
          %v1080 = vpop.f32.mrb[0].mxu0
          %v1081 = vadd.f32 0.0, %v1080
          %v1082 = vpop.f32.mrb[0].mxu0
          %1083 = vmatprep.mubr.f32.mxu0 0.0
          %1084 = vmatmul.mubr.f32.gmra.mrb[0].mxu0 %v355
          %v1085 = vpop.f32.mrb[0].mxu0
          %v1086 = vadd.f32 0.0, %v1085
          %v1087 = vpop.f32.mrb[0].mxu0
          %1088 = vmatprep.mubr.f32.mxu0 0.0
          %1089 = vmatmul.mubr.f32.gmra.mrb[0].mxu0 %v356
          %v1090 = vpop.f32.mrb[0].mxu0
          %v1091 = vadd.f32 0.0, %v1090
          %v1092 = vpop.f32.mrb[0].mxu0
          %1093 = vmatprep.mubr.f32.mxu0 0.0
          %1094 = vmatmul.mubr.f32.gmra.mrb[0].mxu0 %v357
          %v1095 = vpop.f32.mrb[0].mxu0
          %v1096 = vadd.f32 0.0, %v1095
          %v1097 = vpop.f32.mrb[0].mxu0
          %1098 = vmatprep.mubr.f32.mxu0 0.0
          %1099 = vmatmul.mubr.f32.gmra.mrb[0].mxu0 %v358
          %v1100 = vpop.f32.mrb[0].mxu0
          %v1101 = vadd.f32 0.0, %v1100
          %v1102 = vpop.f32.mrb[0].mxu0
          %1103 = vmatprep.mubr.f32.mxu0 0.0
          %1104 = vmatmul.mubr.f32.gmra.mrb[0].mxu0 %v359
          %v1105 = vpop.f32.mrb[0].mxu0
          %v1106 = vadd.f32 0.0, %v1105
          %v1107 = vpop.f32.mrb[0].mxu0
          %1108 = vmatprep.mubr.f32.mxu0 0.0
          %1109 = vmatmul.mubr.f32.gmra.mrb[0].mxu0 %v360
          %v1110 = vpop.f32.mrb[0].mxu0
          %v1111 = vadd.f32 0.0, %v1110
          %v1112 = vpop.f32.mrb[0].mxu0
          %1113 = vmatprep.mubr.f32.mxu0 0.0
          %1114 = vmatmul.mubr.f32.gmra.mrb[0].mxu0 %v361
          %v1115 = vpop.f32.mrb[0].mxu0
          %v1116 = vadd.f32 0.0, %v1115
          %v1117 = vpop.f32.mrb[0].mxu0
          %1118 = vmatprep.mubr.f32.mxu0 0.0
          %1119 = vmatmul.mubr.f32.gmra.mrb[0].mxu0 %v362
          %v1120 = vpop.f32.mrb[0].mxu0
          %v1121 = vadd.f32 0.0, %v1120
          %v1122 = vpop.f32.mrb[0].mxu0
          %1123 = vdwg.mxu0
          %v1124 = vld [vmem:[%s6] sm:$0xf]
          %vm1125 = vcmask 31744
          %v1127 = vsel %vm1125, %v1046, 0
          %v1130 = vsel %vm1125, %v1051, 0
          %v1133 = vsel %vm1125, %v1056, 0
          %v1136 = vsel %vm1125, %v1061, 0
          %v1139 = vsel %vm1125, %v1066, 0
          %v1142 = vsel %vm1125, %v1071, 0
          %v1145 = vsel %vm1125, %v1076, 0
          %v1148 = vsel %vm1125, %v1081, 0
          %v1151 = vsel %vm1125, %v1086, 0
          %v1154 = vsel %vm1125, %v1091, 0
          %v1157 = vsel %vm1125, %v1096, 0
          %v1160 = vsel %vm1125, %v1101, 0
          %v1163 = vsel %vm1125, %v1106, 0
          %v1166 = vsel %vm1125, %v1111, 0
          %v1169 = vsel %vm1125, %v1116, 0
          %v1172 = vsel %vm1125, %v1121, 0
          %vm1174 = vcmask 1043456
          %v1176 = vsel %vm1174, %v1124, 0
          %1178 = vmatprep.subr.mxu0 0.0
          %1179 = vmatpush1.msra.mxu0 %v1176
          %1180 = vmatprep.subr.mxu0 0.0
          %1181 = vmatpush1.msra.mxu0 0.0
          %1182 = vmatprep.subr.mxu0 0.0
          %1183 = vmatpush1.msra.mxu0 0.0
          %1184 = vmatprep.subr.mxu0 0.0
          %1185 = vmatpush1.msra.mxu0 0.0
          %1186 = vmatprep.subr.mxu0 0.0
          %1187 = vmatpush1.msra.mxu0 0.0
          %1188 = vmatprep.subr.mxu0 0.0
          %1189 = vmatpush1.msra.mxu0 0.0
          %1190 = vmatprep.subr.mxu0 0.0
          %1191 = vmatpush1.msra.mxu0 0.0
          %1192 = vmatprep.subr.mxu0 0.0
          %1193 = vmatpush1.msra.mxu0 0.0
          %1194 = vmatprep.subr.mxu0 0.0
          %1195 = vmatpush1.msra.mxu0 0.0
          %1196 = vmatprep.subr.mxu0 0.0
          %1197 = vmatpush1.msra.mxu0 0.0
          %1198 = vmatprep.subr.mxu0 0.0
          %1199 = vmatpush1.msra.mxu0 0.0
          %1200 = vmatprep.subr.mxu0 0.0
          %1201 = vmatpush1.msra.mxu0 0.0
          %1202 = vmatprep.subr.mxu0 0.0
          %1203 = vmatpush1.msra.mxu0 0.0
          %1204 = vmatprep.subr.mxu0 0.0
          %1205 = vmatpush1.msra.mxu0 0.0
          %1206 = vmatprep.subr.mxu0 0.0
          %1207 = vmatpush1.msra.mxu0 0.0
          %1208 = vmatprep.subr.mxu0 0.0
          %1209 = vmatpush1.msra.mxu0 0.0
          %1210 = vmatprep.subr.mxu0 0.0
          %1211 = vmatpush1.msra.mxu0 0.0
          %1212 = vmatprep.subr.mxu0 0.0
          %1213 = vmatpush1.msra.mxu0 0.0
          %1214 = vmatprep.subr.mxu0 0.0
          %1215 = vmatpush1.msra.mxu0 0.0
          %1216 = vmatprep.subr.mxu0 0.0
          %1217 = vmatpush1.msra.mxu0 0.0
          %1218 = vmatprep.subr.mxu0 0.0
          %1219 = vmatpush1.msra.mxu0 0.0
          %1220 = vmatprep.subr.mxu0 0.0
          %1221 = vmatpush1.msra.mxu0 0.0
          %1222 = vmatprep.subr.mxu0 0.0
          %1223 = vmatpush1.msra.mxu0 0.0
          %1224 = vmatprep.subr.mxu0 0.0
          %1225 = vmatpush1.msra.mxu0 0.0
          %1226 = vmatprep.subr.mxu0 0.0
          %1227 = vmatpush1.msra.mxu0 0.0
          %1228 = vmatprep.subr.mxu0 0.0
          %1229 = vmatpush1.msra.mxu0 0.0
          %1230 = vmatprep.subr.mxu0 0.0
          %1231 = vmatpush1.msra.mxu0 0.0
          %1232 = vmatprep.subr.mxu0 0.0
          %1233 = vmatpush1.msra.mxu0 0.0
          %1234 = vmatprep.subr.mxu0 0.0
          %1235 = vmatpush1.msra.mxu0 0.0
          %1236 = vmatprep.subr.mxu0 0.0
          %1237 = vmatpush1.msra.mxu0 0.0
          %1238 = vmatprep.subr.mxu0 0.0
          %1239 = vmatpush1.msra.mxu0 0.0
          %1240 = vmatprep.subr.mxu0 0.0
          %1241 = vmatpush1.msra.mxu0 0.0
          %1242 = vmatprep.mubr.f32.mxu0 0.0
          %1243 = vmatmul.mubr.f32.gmra.mrb[0].mxu0 %v1127
          %v1244 = vpop.f32.mrb[0].mxu0
          %v1245 = vadd.f32 0.0, %v1244
          %v1246 = vpop.f32.mrb[0].mxu0
          %1247 = vmatprep.mubr.f32.mxu0 0.0
          %1248 = vmatmul.mubr.f32.gmra.mrb[0].mxu0 %v1130
          %v1249 = vpop.f32.mrb[0].mxu0
          %v1250 = vadd.f32 0.0, %v1249
          %v1251 = vpop.f32.mrb[0].mxu0
          %1252 = vmatprep.mubr.f32.mxu0 0.0
          %1253 = vmatmul.mubr.f32.gmra.mrb[0].mxu0 %v1133
          %v1254 = vpop.f32.mrb[0].mxu0
          %v1255 = vadd.f32 0.0, %v1254
          %v1256 = vpop.f32.mrb[0].mxu0
          %1257 = vmatprep.mubr.f32.mxu0 0.0
          %1258 = vmatmul.mubr.f32.gmra.mrb[0].mxu0 %v1136
          %v1259 = vpop.f32.mrb[0].mxu0
          %v1260 = vadd.f32 0.0, %v1259
          %v1261 = vpop.f32.mrb[0].mxu0
          %1262 = vmatprep.mubr.f32.mxu0 0.0
          %1263 = vmatmul.mubr.f32.gmra.mrb[0].mxu0 %v1139
          %v1264 = vpop.f32.mrb[0].mxu0
          %v1265 = vadd.f32 0.0, %v1264
          %v1266 = vpop.f32.mrb[0].mxu0
          %1267 = vmatprep.mubr.f32.mxu0 0.0
          %1268 = vmatmul.mubr.f32.gmra.mrb[0].mxu0 %v1142
          %v1269 = vpop.f32.mrb[0].mxu0
          %v1270 = vadd.f32 0.0, %v1269
          %v1271 = vpop.f32.mrb[0].mxu0
          %1272 = vmatprep.mubr.f32.mxu0 0.0
          %1273 = vmatmul.mubr.f32.gmra.mrb[0].mxu0 %v1145
          %v1274 = vpop.f32.mrb[0].mxu0
          %v1275 = vadd.f32 0.0, %v1274
          %v1276 = vpop.f32.mrb[0].mxu0
          %1277 = vmatprep.mubr.f32.mxu0 0.0
          %1278 = vmatmul.mubr.f32.gmra.mrb[0].mxu0 %v1148
          %v1279 = vpop.f32.mrb[0].mxu0
          %v1280 = vadd.f32 0.0, %v1279
          %v1281 = vpop.f32.mrb[0].mxu0
          %1282 = vmatprep.mubr.f32.mxu0 0.0
          %1283 = vmatmul.mubr.f32.gmra.mrb[0].mxu0 %v1151
          %v1284 = vpop.f32.mrb[0].mxu0
          %v1285 = vadd.f32 0.0, %v1284
          %v1286 = vpop.f32.mrb[0].mxu0
          %1287 = vmatprep.mubr.f32.mxu0 0.0
          %1288 = vmatmul.mubr.f32.gmra.mrb[0].mxu0 %v1154
          %v1289 = vpop.f32.mrb[0].mxu0
          %v1290 = vadd.f32 0.0, %v1289
          %v1291 = vpop.f32.mrb[0].mxu0
          %1292 = vmatprep.mubr.f32.mxu0 0.0
          %1293 = vmatmul.mubr.f32.gmra.mrb[0].mxu0 %v1157
          %v1294 = vpop.f32.mrb[0].mxu0
          %v1295 = vadd.f32 0.0, %v1294
          %v1296 = vpop.f32.mrb[0].mxu0
          %1297 = vmatprep.mubr.f32.mxu0 0.0
          %1298 = vmatmul.mubr.f32.gmra.mrb[0].mxu0 %v1160
          %v1299 = vpop.f32.mrb[0].mxu0
          %v1300 = vadd.f32 0.0, %v1299
          %v1301 = vpop.f32.mrb[0].mxu0
          %1302 = vmatprep.mubr.f32.mxu0 0.0
          %1303 = vmatmul.mubr.f32.gmra.mrb[0].mxu0 %v1163
          %v1304 = vpop.f32.mrb[0].mxu0
          %v1305 = vadd.f32 0.0, %v1304
          %v1306 = vpop.f32.mrb[0].mxu0
          %1307 = vmatprep.mubr.f32.mxu0 0.0
          %1308 = vmatmul.mubr.f32.gmra.mrb[0].mxu0 %v1166
          %v1309 = vpop.f32.mrb[0].mxu0
          %v1310 = vadd.f32 0.0, %v1309
          %v1311 = vpop.f32.mrb[0].mxu0
          %1312 = vmatprep.mubr.f32.mxu0 0.0
          %1313 = vmatmul.mubr.f32.gmra.mrb[0].mxu0 %v1169
          %v1314 = vpop.f32.mrb[0].mxu0
          %v1315 = vadd.f32 0.0, %v1314
          %v1316 = vpop.f32.mrb[0].mxu0
          %1317 = vmatprep.mubr.f32.mxu0 0.0
          %1318 = vmatmul.mubr.f32.gmra.mrb[0].mxu0 %v1172
          %v1319 = vpop.f32.mrb[0].mxu0
          %v1320 = vadd.f32 0.0, %v1319
          %v1321 = vpop.f32.mrb[0].mxu0
          %1322 = vdwg.mxu0
          %v1323 = vld [vmem:[%s336] sm:$0xff]
          %v1324 = vld [vmem:[%s336 + $0x8] sm:$0xff]
          %v1325 = vld [vmem:[%s336 + $0x10] sm:$0xff]
          %v1326 = vld [vmem:[%s336 + $0x18] sm:$0xff]
          %v1327 = vld [vmem:[%s336 + $0x20] sm:$0xff]
          %v1328 = vld [vmem:[%s336 + $0x28] sm:$0xff]
          %v1329 = vld [vmem:[%s336 + $0x30] sm:$0xff]
          %v1330 = vld [vmem:[%s336 + $0x38] sm:$0xff]
          %v1331 = vld [vmem:[%s336 + $0x40] sm:$0xff]
          %v1332 = vld [vmem:[%s336 + $0x48] sm:$0xff]
          %v1333 = vld [vmem:[%s336 + $0x50] sm:$0xff]
          %v1334 = vld [vmem:[%s336 + $0x58] sm:$0xff]
          %v1335 = vld [vmem:[%s336 + $0x60] sm:$0xff]
          %v1336 = vld [vmem:[%s336 + $0x68] sm:$0xff]
          %v1337 = vld [vmem:[%s336 + $0x70] sm:$0xff]
          %v1338 = vld [vmem:[%s336 + $0x78] sm:$0xff]
          %v1339 = vadd.f32 %v1323, %v1245
          %v1340 = vadd.f32 %v1324, %v1250
          %v1341 = vadd.f32 %v1325, %v1255
          %v1342 = vadd.f32 %v1326, %v1260
          %v1343 = vadd.f32 %v1327, %v1265
          %v1344 = vadd.f32 %v1328, %v1270
          %v1345 = vadd.f32 %v1329, %v1275
          %v1346 = vadd.f32 %v1330, %v1280
          %v1347 = vadd.f32 %v1331, %v1285
          %v1348 = vadd.f32 %v1332, %v1290
          %v1349 = vadd.f32 %v1333, %v1295
          %v1350 = vadd.f32 %v1334, %v1300
          %v1351 = vadd.f32 %v1335, %v1305
          %v1352 = vadd.f32 %v1336, %v1310
          %v1353 = vadd.f32 %v1337, %v1315
          %v1354 = vadd.f32 %v1338, %v1320
          %1355 = vst [vmem:[%s336] sm:$0xff] %v1339
          %1356 = vst [vmem:[%s336 + $0x8] sm:$0xff] %v1340
          %1357 = vst [vmem:[%s336 + $0x10] sm:$0xff] %v1341
          %1358 = vst [vmem:[%s336 + $0x18] sm:$0xff] %v1342
          %1359 = vst [vmem:[%s336 + $0x20] sm:$0xff] %v1343
          %1360 = vst [vmem:[%s336 + $0x28] sm:$0xff] %v1344
          %1361 = vst [vmem:[%s336 + $0x30] sm:$0xff] %v1345
          %1362 = vst [vmem:[%s336 + $0x38] sm:$0xff] %v1346
          %1363 = vst [vmem:[%s336 + $0x40] sm:$0xff] %v1347
          %1364 = vst [vmem:[%s336 + $0x48] sm:$0xff] %v1348
          %1365 = vst [vmem:[%s336 + $0x50] sm:$0xff] %v1349
          %1366 = vst [vmem:[%s336 + $0x58] sm:$0xff] %v1350
          %1367 = vst [vmem:[%s336 + $0x60] sm:$0xff] %v1351
          %1368 = vst [vmem:[%s336 + $0x68] sm:$0xff] %v1352
          %1369 = vst [vmem:[%s336 + $0x70] sm:$0xff] %v1353
          %1370 = vst [vmem:[%s336 + $0x78] sm:$0xff] %v1354
        $region60: #{tpu_custom_call.1} parent=47 // pred_fallthru
          _
        %s1371 = sand.u32 %s208, 1
        %s1372 = scalar_lea.sflag [#allocation4], %s1371
        %s1373 = sand.u32 %s208, 1
        %s1374 = smul.addr %s1373, 128
        %s1375 = scalar_lea.vmem [#allocation5], %s1374
        // Predicated region
        $region61: #{tpu_custom_call.1} parent=47 // pred_check
          %p1376 = pneg %p218
        $region62: #{tpu_custom_call.1} parent=47 // pred_check_branch
          %1378 = sbr.rel (%p1376) target = $region64
        $region63: #{tpu_custom_call.1} parent=47 // pred_region
          %s1379 = smul.u32 16, %s29
          %s1381 = ssub.s32 2048, 2048
          %1382 = vsyncadd %s1372, %s1381
          %s1383 = smul.addr %s1379, 3
          %s1384 = sadd.s32 %s28, %s1383
          %s1385 = smul.addr %s1384, 128
          %s1386 = scalar_lea.hbm %s7, %s1385
          %s1387 = sshll.u32 %s1375, 4
          %s1388 = int_to_ptr.vmem [resolvable:$true] %s1387
          %1393 = dma.vmem_to_hbm [thread:$0]  %s1388, 2048, %s1386, %s1372, 128, 384, 8
        $region64: #{tpu_custom_call.1} parent=47 // pred_fallthru
          _
      $region48: #{tpu_custom_call.1} parent=5 // pred_fallthru
        _
      %p1394 = scmp.le.s32.totalorder 2, %s19
      // Predicated region
      $region65: #{tpu_custom_call.1} parent=5 // pred_check
        %p1395 = pneg %p1394
      $region66: #{tpu_custom_call.1} parent=5 // pred_check_branch
        %1397 = sbr.rel (%p1395) target = $region68
      $region67: #{tpu_custom_call.1} parent=5 // pred_region
        %s1398 = ssub.s32 %s19, 2
        // Predicated region
        $region69: #{tpu_custom_call.1} parent=67 // pred_check
          %p1399 = pneg %p224
        $region70: #{tpu_custom_call.1} parent=67 // pred_check_branch
          %1401 = sbr.rel (%p1399) target = $region72
        $region71: #{tpu_custom_call.1} parent=67 // pred_region
          %s1402 = sand.u32 %s209, 1
          %s1403 = scalar_lea.sflag [#allocation4], %s1402
          %s1404 = sand.u32 %s209, 1
          %s1405 = smul.addr %s1404, 128
          %s1406 = scalar_lea.vmem [#allocation5], %s1405
          %1407 = dma.done %s1403, 2048
        $region72: #{tpu_custom_call.1} parent=67 // pred_fallthru
          _
      $region68: #{tpu_custom_call.1} parent=5 // pred_fallthru
        _
    $region6: #{tpu_custom_call.1} parent=1 // loop_footer
      %s23 = sadd.s32 1, %s19
    $region7: #{tpu_custom_call.1} parent=1 // loop_footer_branch
      %18 = sbr.rel target = $region3
    $region8: #{tpu_custom_call.1} parent=1 // loop_exit
      _
    %1408 = vsyncpa [#allocation3], 1
    %s1409 = scalar_lea.sflag [#allocation3], 1
    %1410 = vsyncpa %s1409, 1
    %1411 = vsyncpa [#allocation4], 1
    %s1412 = scalar_lea.sflag [#allocation4], 1
    %1413 = vsyncpa %s1412, 1

</llo_original>
